<compile_context>
chip_gen: v7x
topology: tpu7x:2x2x1
jax: 0.10.0
libtpu: 0.0.40
codegen_flags: <defaults>
</compile_context>

<pallas_src>
import functools

import jax
import jax.numpy as jnp
from jax.experimental import pallas as pl
from jax.experimental.pallas import tpu as pltpu


def _round_up(x, m):
    return ((x + m - 1) // m) * m


def _pick_strip_rows(H, W, max_lanes=8192):
    """Largest divisor of H such that one row strip is at most max_lanes lanes wide."""
    best = 1
    for r in range(1, H + 1):
        if H % r == 0 and r * W <= max_lanes:
            best = r
    return best


# ----------------------------------------------------------------------------
# Stage 1: per-image fused conv3x3 + bias + ReLU + global-average-pool
# ----------------------------------------------------------------------------
def _conv_gap_kernel(x_ref, wk_ref, bc_ref, mask_ref, o_ref, flat_ref, *, rs, img_h, img_w):
    """One image per grid step.

    x_ref   : (1, C, H*W)       f32  image, channel planes flattened (spatial on lanes)
    wk_ref  : (CMID_PAD, K_PAD) f32  conv weights^T, tap-major columns, zero padded
    bc_ref  : (CMID_PAD, 1)     f32  conv bias column, zero padded
    mask_ref: (K_PAD, rs*W)     f32  per-tap validity mask for one row strip
    o_ref   : (1, CMID_PAD, 1)  f32  pooled (GAP of ReLU(conv)) activation for this image
    flat_ref: (C, H*W + 2W + 2) f32  scratch: zero-bordered flat image (the "same" padding)
    """
    H, W = img_h, img_w
    HW = H * W
    C = flat_ref.shape[0]
    Lp = flat_ref.shape[1]
    cmid_pad, k_pad = wk_ref.shape
    n_strips = H // rs
    off = W + 1                                   # image start inside the zero-bordered scratch

    # Zero halo + one contiguous interior copy: the conv zero padding exists only in VMEM.
    dt = x_ref.dtype
    flat_ref[:, 0:off] = jnp.zeros((C, off), dt)
    flat_ref[:, off + HW:Lp] = jnp.zeros((C, Lp - off - HW), dt)
    flat_ref[:, off:off + HW] = x_ref[0]

    wk = wk_ref[...]                              # (CMID_PAD, K_PAD), VMEM resident
    bc = bc_ref[...]                              # (CMID_PAD, 1)
    mask = mask_ref[...]                          # (K_PAD, rs*W)

    acc = jnp.zeros((cmid_pad, 1), jnp.float32)
    for s in range(n_strips):                     # short static (unrolled) loop over row strips
        base = s * rs * W
        rows = []
        # Tap (dh, dw, c) of output pixel p reads flat index p + dh*W + dw -> pure lane slice.
        for dh in range(3):
            for dw in range(3):
                for c in range(C):
                    lo = base + dh * W + dw
                    rows.append(flat_ref[c:c + 1, lo:lo + rs * W])       # (1, rs*W)
        for _ in range(k_pad - 9 * C):
            rows.append(rows[0])                  # K padding rows (zeroed by the mask below)
        # im2col block with spatial on lanes; mask kills row-wrap lanes of dw=0 / dw=2 taps.
        patches = jnp.concatenate(rows, axis=0) * mask                   # (K_PAD, rs*W)
        # ONE fused GEMM per strip (was nine K=3 GEMMs): (128, 32) @ (32, rs*W).
        conv = jnp.dot(wk, patches, preferred_element_type=jnp.float32)  # (CMID_PAD, rs*W)
        conv = jnp.maximum(conv + bc, 0.0)                               # bias + ReLU
        acc = acc + jnp.sum(conv, axis=1, keepdims=True)                 # GAP partial sum

    o_ref[0] = acc * (1.0 / (H * W))              # (CMID_PAD, 1), never round-trips conv to HBM


# ----------------------------------------------------------------------------
# Stage 2: batched FaceNet head — FC(Cmid_pad -> 512) + L2-normalize, once per batch
# ----------------------------------------------------------------------------
def _head_kernel(p_ref, wf_ref, bf_ref, o_ref):
    """p_ref: (B, CMID_PAD)  wf_ref: (CMID_PAD, D)  bf_ref: (1, D)  o_ref: (B, D)."""
    feat = jnp.dot(p_ref[...], wf_ref[...], preferred_element_type=jnp.float32) + bf_ref[...]
    ssq = jnp.sum(feat * feat, axis=-1, keepdims=True)
    # x / max(||x||, 1e-12) == x * rsqrt(max(||x||^2, 1e-24)); rsqrt goes to the EUP slot.
    o_ref[...] = feat * jax.lax.rsqrt(jnp.maximum(ssq, 1e-24))


# ----------------------------------------------------------------------------
# Parameters (synthetic conv stem + FaceNet-style head)
# ----------------------------------------------------------------------------
def init_params(key, cin=3, cmid=32, embed_dim=512):
    k1, k2, k3, k4 = jax.random.split(key, 4)
    w_conv = jax.random.normal(k1, (3, 3, cin, cmid), jnp.float32) * 0.1   # HWIO
    b_conv = jax.random.normal(k2, (1, cmid), jnp.float32) * 0.01
    w_fc = jax.random.normal(k3, (cmid, embed_dim), jnp.float32) * 0.05
    b_fc = jax.random.normal(k4, (1, embed_dim), jnp.float32) * 0.01
    return dict(w_conv=w_conv, b_conv=b_conv, w_fc=w_fc, b_fc=b_fc)


# ----------------------------------------------------------------------------
# VisualEncoder forward (detect_faces=False path, tensor input)
# ----------------------------------------------------------------------------
@jax.jit
def visual_encoder_forward(images_nchw, params):
    """images_nchw: (B, 3, H, W) float32 in [0, 1]; returns (B, 512) L2-normalized features."""
    # Face-detector bypass (detect_faces=False, tensor input): faces = images.
    faces = images_nchw.astype(jnp.float32)
    B, C, H, W = faces.shape
    cmid = params["w_conv"].shape[-1]
    D = params["w_fc"].shape[-1]

    if B == 0:  # module returns zeros(0, output_dim) for empty batches
        return jnp.zeros((0, D), jnp.float32)

    CMID_PAD = _round_up(cmid, 128)               # lane-dense post-conv path
    K_TAPS = 9 * C
    K_PAD = _round_up(K_TAPS, 8)                  # 27 -> 32 contraction depth
    rs = _pick_strip_rows(H, W)                   # row-strip height (divides H)
    Lp = H * W + 2 * W + 2                        # zero-bordered flat plane length

    # Free reshape (contiguous NCHW): spatial dim lands on the 128-lane axis in the kernel.
    x_flat = faces.reshape(B, C, H * W)

    # Conv weights HWIO (3,3,C,cmid) -> tap-major (K_TAPS, cmid), zero-pad, transpose.
    wk = params["w_conv"].reshape(K_TAPS, cmid).astype(jnp.float32)
    wk_t = jnp.pad(wk, ((0, K_PAD - K_TAPS), (0, CMID_PAD - cmid))).T          # (CMID_PAD, K_PAD)
    bc = jnp.pad(params["b_conv"].reshape(cmid).astype(jnp.float32),
                 (0, CMID_PAD - cmid)).reshape(CMID_PAD, 1)                    # (CMID_PAD, 1)
    wf = jnp.pad(params["w_fc"].astype(jnp.float32), ((0, CMID_PAD - cmid), (0, 0)))  # (CMID_PAD, D)
    bf = params["b_fc"].astype(jnp.float32)                                    # (1, D)

    # Per-tap validity mask for one row strip: dw=0 taps are invalid at x==0, dw=2 at x==W-1
    # (those lanes would otherwise read the neighbouring row in the flat layout); padding rows 0.
    cols = jnp.arange(rs * W, dtype=jnp.int32) % W
    m_by_dw = [(cols != 0).astype(jnp.float32),
               jnp.ones((rs * W,), jnp.float32),
               (cols != W - 1).astype(jnp.float32)]
    mask_rows = []
    for dh in range(3):
        for dw in range(3):
            for c in range(C):
                mask_rows.append(m_by_dw[dw])
    mask_rows += [jnp.zeros((rs * W,), jnp.float32)] * (K_PAD - K_TAPS)
    tapmask = jnp.stack(mask_rows, axis=0)                                     # (K_PAD, rs*W)

    # Stage 1: fused conv + ReLU + GAP, one image per grid step.
    # (For tiny images one could block several images per step to amortize the ~0.35us/step
    #  overhead; irrelevant at the real 160x160 size, so kept one image per step.)
    pooled3 = pl.pallas_call(
        functools.partial(_conv_gap_kernel, rs=rs, img_h=H, img_w=W),
        out_shape=jax.ShapeDtypeStruct((B, CMID_PAD, 1), jnp.float32),
        grid_spec=pltpu.PrefetchScalarGridSpec(
            num_scalar_prefetch=0,
            grid=(B,),
            in_specs=[
                pl.BlockSpec((1, C, H * W), lambda b: (b, 0, 0)),        # per-image block
                pl.BlockSpec((CMID_PAD, K_PAD), lambda b: (0, 0)),       # weights, resident
                pl.BlockSpec((CMID_PAD, 1), lambda b: (0, 0)),           # bias, resident
                pl.BlockSpec((K_PAD, rs * W), lambda b: (0, 0)),         # tap mask, resident
            ],
            out_specs=pl.BlockSpec((1, CMID_PAD, 1), lambda b: (b, 0, 0)),
            scratch_shapes=[pltpu.VMEM((C, Lp), jnp.float32)],           # zero-bordered flat image
        ),
        compiler_params=pltpu.CompilerParams(
            dimension_semantics=("parallel",),       # batch shards across v7x's 2 TensorCores
            vmem_limit_bytes=32 * 1024 * 1024,       # ~8 MB actually used at 160x160; headroom
        ),
    )(x_flat, wk_t, bc, tapmask)
    pooled = pooled3.reshape(B, CMID_PAD)

    # Stage 2: batched FC + L2-normalize (M=B GEMM, lane-dense 512-wide output).
    feats = pl.pallas_call(
        _head_kernel,
        out_shape=jax.ShapeDtypeStruct((B, D), jnp.float32),
        grid_spec=pltpu.PrefetchScalarGridSpec(
            num_scalar_prefetch=0,
            grid=(1,),
            in_specs=[
                pl.BlockSpec((B, CMID_PAD), lambda i: (0, 0)),
                pl.BlockSpec((CMID_PAD, D), lambda i: (0, 0)),
                pl.BlockSpec((1, D), lambda i: (0, 0)),
            ],
            out_specs=pl.BlockSpec((B, D), lambda i: (0, 0)),
        ),
        compiler_params=pltpu.CompilerParams(dimension_semantics=("arbitrary",)),
    )(pooled, wf, bf)

    # projection == nn.Identity() because output_dim == 512.
    return feats


# ----------------------------------------------------------------------------
# Pure-JAX reference (same math, f32 everywhere) for a correctness check
# ----------------------------------------------------------------------------
@jax.jit
def _reference_forward(images_nchw, params):
    x = jnp.transpose(images_nchw, (0, 2, 3, 1))
    B, H, W, C = x.shape
    xp = jnp.pad(x, ((0, 0), (1, 1), (1, 1), (0, 0)))
    cols = [xp[:, dh:dh + H, dw:dw + W, :] for dh in range(3) for dw in range(3)]
    patches = jnp.concatenate(cols, axis=-1).reshape(B, H * W, 9 * C)
    w_flat = params["w_conv"].reshape(9 * C, -1)
    conv = jnp.maximum(jnp.einsum("bmk,kn->bmn", patches, w_flat) + params["b_conv"], 0.0)
    pooled = conv.mean(axis=1)
    feat = pooled @ params["w_fc"] + params["b_fc"]
    nrm = jnp.sqrt(jnp.sum(feat * feat, axis=-1, keepdims=True))
    return feat / jnp.maximum(nrm, 1e-12)


if __name__ == "__main__":
    key = jax.random.PRNGKey(0)
    k_img, k_par = jax.random.split(key)

    B, C, H, W = 2, 3, 16, 16                       # small stand-in for (B, 3, 160, 160)
    images = jax.random.uniform(k_img, (B, C, H, W), jnp.float32)   # in [0, 1]
    params = init_params(k_par, cin=C, cmid=32, embed_dim=512)

    feats = jax.block_until_ready(visual_encoder_forward(images, params))

    assert feats.shape == (B, 512)
    assert bool(jnp.all(jnp.isfinite(feats)))

    # Embeddings are L2-normalized.
    norms = jnp.sqrt(jnp.sum(feats * feats, axis=-1))
    assert bool(jnp.max(jnp.abs(norms - 1.0)) < 1e-3)

    # Numerics vs. pure-JAX f32 reference.
    ref = jax.block_until_ready(_reference_forward(images, params))
    max_err = float(jnp.max(jnp.abs(feats - ref)))
    assert max_err < 2e-2, f"mismatch vs reference: max abs err {max_err}"

    print("KERNEL_OK")
</pallas_src>

<mosaic_0001>
module attributes {stable_mosaic.version = 11 : i64} {
  func.func @_conv_gap_kernel(%arg0: i32, %arg1: memref<1x3x256xf32, #tpu.memory_space<vmem>>, %arg2: memref<128x32xf32, #tpu.memory_space<vmem>>, %arg3: memref<128x1xf32, #tpu.memory_space<vmem>>, %arg4: memref<32x256xf32, #tpu.memory_space<vmem>>, %arg5: memref<1x128x1xf32, #tpu.memory_space<vmem>>, %arg6: memref<3x290xf32, #tpu.memory_space<vmem>>) attributes {dimension_semantics = [#tpu.dimension_semantics<parallel>], iteration_bounds = array<i64: 2>, scalar_prefetch = 0 : i64, scratch_operands = 1 : i64, tpu.core_type = #tpu.core_type<tc>, window_params = [{transform_indices = @transform_0, window_bounds = array<i64: 1, 3, 256>}, {pipeline_mode = #tpu.pipeline_mode<synchronous>, transform_indices = @transform_1, window_bounds = array<i64: 128, 32>}, {pipeline_mode = #tpu.pipeline_mode<synchronous>, transform_indices = @transform_2, window_bounds = array<i64: 128, 1>}, {pipeline_mode = #tpu.pipeline_mode<synchronous>, transform_indices = @transform_3, window_bounds = array<i64: 32, 256>}, {transform_indices = @transform_4, window_bounds = array<i64: 1, 128, 1>}]} {
    %cst = arith.constant 0.000000e+00 : f32
    %0 = vector.broadcast %cst : f32 to vector<3x17xf32>
    %c0 = arith.constant 0 : index
    %c0_0 = arith.constant 0 : index
    %1 = vector.load %arg6[%c0, %c0_0] : memref<3x290xf32, #tpu.memory_space<vmem>>, vector<3x17xf32>
    tpu.vector_store %arg6[%c0, %c0_0], %0 {strides = array<i32>} : memref<3x290xf32, #tpu.memory_space<vmem>>, vector<3x17xf32>,
    %cst_1 = arith.constant 0.000000e+00 : f32
    %2 = vector.broadcast %cst_1 : f32 to vector<3x17xf32>
    %c0_2 = arith.constant 0 : index
    %c273 = arith.constant 273 : index
    %3 = vector.load %arg6[%c0_2, %c273] : memref<3x290xf32, #tpu.memory_space<vmem>>, vector<3x17xf32>
    tpu.vector_store %arg6[%c0_2, %c273], %2 {strides = array<i32>} : memref<3x290xf32, #tpu.memory_space<vmem>>, vector<3x17xf32>,
    %c0_3 = arith.constant 0 : index
    %c0_4 = arith.constant 0 : index
    %c0_5 = arith.constant 0 : index
    %4 = vector.load %arg1[%c0_3, %c0_4, %c0_5] : memref<1x3x256xf32, #tpu.memory_space<vmem>>, vector<1x3x256xf32>
    %5 = vector.shape_cast %4 : vector<1x3x256xf32> to vector<3x256xf32>
    %c0_6 = arith.constant 0 : index
    %c17 = arith.constant 17 : index
    %6 = vector.load %arg6[%c0_6, %c17] : memref<3x290xf32, #tpu.memory_space<vmem>>, vector<3x256xf32>
    tpu.vector_store %arg6[%c0_6, %c17], %5 {strides = array<i32>} : memref<3x290xf32, #tpu.memory_space<vmem>>, vector<3x256xf32>,
    %c0_7 = arith.constant 0 : index
    %c0_8 = arith.constant 0 : index
    %7 = vector.load %arg2[%c0_7, %c0_8] : memref<128x32xf32, #tpu.memory_space<vmem>>, vector<128x32xf32>
    %c0_9 = arith.constant 0 : index
    %c0_10 = arith.constant 0 : index
    %8 = vector.load %arg3[%c0_9, %c0_10] : memref<128x1xf32, #tpu.memory_space<vmem>>, vector<128x1xf32>
    %c0_11 = arith.constant 0 : index
    %c0_12 = arith.constant 0 : index
    %9 = vector.load %arg4[%c0_11, %c0_12] : memref<32x256xf32, #tpu.memory_space<vmem>>, vector<32x256xf32>
    %cst_13 = arith.constant 0.000000e+00 : f32
    %10 = vector.broadcast %cst_13 : f32 to vector<128x1xf32>
    %c0_14 = arith.constant 0 : index
    %c0_15 = arith.constant 0 : index
    %11 = vector.load %arg6[%c0_14, %c0_15] : memref<3x290xf32, #tpu.memory_space<vmem>>, vector<1x256xf32>
    %c1 = arith.constant 1 : index
    %c0_16 = arith.constant 0 : index
    %12 = vector.load %arg6[%c1, %c0_16] : memref<3x290xf32, #tpu.memory_space<vmem>>, vector<1x256xf32>
    %c2 = arith.constant 2 : index
    %c0_17 = arith.constant 0 : index
    %13 = vector.load %arg6[%c2, %c0_17] : memref<3x290xf32, #tpu.memory_space<vmem>>, vector<1x256xf32>
    %c0_18 = arith.constant 0 : index
    %c1_19 = arith.constant 1 : index
    %14 = vector.load %arg6[%c0_18, %c1_19] : memref<3x290xf32, #tpu.memory_space<vmem>>, vector<1x256xf32>
    %c1_20 = arith.constant 1 : index
    %c1_21 = arith.constant 1 : index
    %15 = vector.load %arg6[%c1_20, %c1_21] : memref<3x290xf32, #tpu.memory_space<vmem>>, vector<1x256xf32>
    %c2_22 = arith.constant 2 : index
    %c1_23 = arith.constant 1 : index
    %16 = vector.load %arg6[%c2_22, %c1_23] : memref<3x290xf32, #tpu.memory_space<vmem>>, vector<1x256xf32>
    %c0_24 = arith.constant 0 : index
    %c2_25 = arith.constant 2 : index
    %17 = vector.load %arg6[%c0_24, %c2_25] : memref<3x290xf32, #tpu.memory_space<vmem>>, vector<1x256xf32>
    %c1_26 = arith.constant 1 : index
    %c2_27 = arith.constant 2 : index
    %18 = vector.load %arg6[%c1_26, %c2_27] : memref<3x290xf32, #tpu.memory_space<vmem>>, vector<1x256xf32>
    %c2_28 = arith.constant 2 : index
    %c2_29 = arith.constant 2 : index
    %19 = vector.load %arg6[%c2_28, %c2_29] : memref<3x290xf32, #tpu.memory_space<vmem>>, vector<1x256xf32>
    %c0_30 = arith.constant 0 : index
    %c16 = arith.constant 16 : index
    %20 = vector.load %arg6[%c0_30, %c16] : memref<3x290xf32, #tpu.memory_space<vmem>>, vector<1x256xf32>
    %c1_31 = arith.constant 1 : index
    %c16_32 = arith.constant 16 : index
    %21 = vector.load %arg6[%c1_31, %c16_32] : memref<3x290xf32, #tpu.memory_space<vmem>>, vector<1x256xf32>
    %c2_33 = arith.constant 2 : index
    %c16_34 = arith.constant 16 : index
    %22 = vector.load %arg6[%c2_33, %c16_34] : memref<3x290xf32, #tpu.memory_space<vmem>>, vector<1x256xf32>
    %c0_35 = arith.constant 0 : index
    %c17_36 = arith.constant 17 : index
    %23 = vector.load %arg6[%c0_35, %c17_36] : memref<3x290xf32, #tpu.memory_space<vmem>>, vector<1x256xf32>
    %c1_37 = arith.constant 1 : index
    %c17_38 = arith.constant 17 : index
    %24 = vector.load %arg6[%c1_37, %c17_38] : memref<3x290xf32, #tpu.memory_space<vmem>>, vector<1x256xf32>
    %c2_39 = arith.constant 2 : index
    %c17_40 = arith.constant 17 : index
    %25 = vector.load %arg6[%c2_39, %c17_40] : memref<3x290xf32, #tpu.memory_space<vmem>>, vector<1x256xf32>
    %c0_41 = arith.constant 0 : index
    %c18 = arith.constant 18 : index
    %26 = vector.load %arg6[%c0_41, %c18] : memref<3x290xf32, #tpu.memory_space<vmem>>, vector<1x256xf32>
    %c1_42 = arith.constant 1 : index
    %c18_43 = arith.constant 18 : index
    %27 = vector.load %arg6[%c1_42, %c18_43] : memref<3x290xf32, #tpu.memory_space<vmem>>, vector<1x256xf32>
    %c2_44 = arith.constant 2 : index
    %c18_45 = arith.constant 18 : index
    %28 = vector.load %arg6[%c2_44, %c18_45] : memref<3x290xf32, #tpu.memory_space<vmem>>, vector<1x256xf32>
    %c0_46 = arith.constant 0 : index
    %c32 = arith.constant 32 : index
    %29 = vector.load %arg6[%c0_46, %c32] : memref<3x290xf32, #tpu.memory_space<vmem>>, vector<1x256xf32>
    %c1_47 = arith.constant 1 : index
    %c32_48 = arith.constant 32 : index
    %30 = vector.load %arg6[%c1_47, %c32_48] : memref<3x290xf32, #tpu.memory_space<vmem>>, vector<1x256xf32>
    %c2_49 = arith.constant 2 : index
    %c32_50 = arith.constant 32 : index
    %31 = vector.load %arg6[%c2_49, %c32_50] : memref<3x290xf32, #tpu.memory_space<vmem>>, vector<1x256xf32>
    %c0_51 = arith.constant 0 : index
    %c33 = arith.constant 33 : index
    %32 = vector.load %arg6[%c0_51, %c33] : memref<3x290xf32, #tpu.memory_space<vmem>>, vector<1x256xf32>
    %c1_52 = arith.constant 1 : index
    %c33_53 = arith.constant 33 : index
    %33 = vector.load %arg6[%c1_52, %c33_53] : memref<3x290xf32, #tpu.memory_space<vmem>>, vector<1x256xf32>
    %c2_54 = arith.constant 2 : index
    %c33_55 = arith.constant 33 : index
    %34 = vector.load %arg6[%c2_54, %c33_55] : memref<3x290xf32, #tpu.memory_space<vmem>>, vector<1x256xf32>
    %c0_56 = arith.constant 0 : index
    %c34 = arith.constant 34 : index
    %35 = vector.load %arg6[%c0_56, %c34] : memref<3x290xf32, #tpu.memory_space<vmem>>, vector<1x256xf32>
    %c1_57 = arith.constant 1 : index
    %c34_58 = arith.constant 34 : index
    %36 = vector.load %arg6[%c1_57, %c34_58] : memref<3x290xf32, #tpu.memory_space<vmem>>, vector<1x256xf32>
    %c2_59 = arith.constant 2 : index
    %c34_60 = arith.constant 34 : index
    %37 = vector.load %arg6[%c2_59, %c34_60] : memref<3x290xf32, #tpu.memory_space<vmem>>, vector<1x256xf32>
    %38 = tpu.concatenate %11, %12, %13, %14, %15, %16, %17, %18, %19, %20, %21, %22, %23, %24, %25, %26 in 0 : vector<1x256xf32>, vector<1x256xf32>, vector<1x256xf32>, vector<1x256xf32>, vector<1x256xf32>, vector<1x256xf32>, vector<1x256xf32>, vector<1x256xf32>, vector<1x256xf32>, vector<1x256xf32>, vector<1x256xf32>, vector<1x256xf32>, vector<1x256xf32>, vector<1x256xf32>, vector<1x256xf32>, vector<1x256xf32> -> vector<16x256xf32>
    %39 = tpu.concatenate %27, %28, %29, %30, %31, %32, %33, %34, %35, %36, %37, %11, %11, %11, %11, %11 in 0 : vector<1x256xf32>, vector<1x256xf32>, vector<1x256xf32>, vector<1x256xf32>, vector<1x256xf32>, vector<1x256xf32>, vector<1x256xf32>, vector<1x256xf32>, vector<1x256xf32>, vector<1x256xf32>, vector<1x256xf32>, vector<1x256xf32>, vector<1x256xf32>, vector<1x256xf32>, vector<1x256xf32>, vector<1x256xf32> -> vector<16x256xf32>
    %40 = tpu.concatenate %38, %39 in 0 : vector<16x256xf32>, vector<16x256xf32> -> vector<32x256xf32>
    %41 = arith.mulf %40, %9 : vector<32x256xf32>
    %cst_61 = arith.constant dense<0.000000e+00> : vector<128x256xf32>
    %42 = tpu.matmul %7, %41, %cst_61 {dimension_numbers = #tpu.dot_dimension_numbers<[1], [0], [0], [1], [0, 0, 1, 1], [], []>} : vector<128x32xf32>, vector<32x256xf32>, vector<128x256xf32> -> vector<128x256xf32>
    %43 = vector.broadcast %8 : vector<128x1xf32> to vector<128x256xf32>
    %44 = arith.addf %42, %43 : vector<128x256xf32>
    %cst_62 = arith.constant 0.000000e+00 : f32
    %45 = vector.broadcast %cst_62 : f32 to vector<128x256xf32>
    %46 = arith.maximumf %44, %45 : vector<128x256xf32>
    %cst_63 = arith.constant dense<0.000000e+00> : vector<128xf32>
    %47 = vector.multi_reduction <add>, %46, %cst_63 [1] : vector<128x256xf32> to vector<128xf32>
    %48 = vector.shape_cast %47 : vector<128xf32> to vector<128x1xf32>
    %49 = arith.addf %10, %48 : vector<128x1xf32>
    %cst_64 = arith.constant 3.906250e-03 : f32
    %50 = vector.broadcast %cst_64 : f32 to vector<128x1xf32>
    %51 = arith.mulf %49, %50 : vector<128x1xf32>
    %c0_65 = arith.constant 0 : index
    %c0_66 = arith.constant 0 : index
    %c0_67 = arith.constant 0 : index
    %52 = vector.load %arg5[%c0_65, %c0_66, %c0_67] : memref<1x128x1xf32, #tpu.memory_space<vmem>>, vector<1x128x1xf32>
    %53 = vector.shape_cast %52 : vector<1x128x1xf32> to vector<128x1xf32>
    %54 = vector.shape_cast %51 : vector<128x1xf32> to vector<1x128x1xf32>
    tpu.vector_store %arg5[%c0_65, %c0_66, %c0_67], %54 {strides = array<i32>} : memref<1x128x1xf32, #tpu.memory_space<vmem>>, vector<1x128x1xf32>,
    return
  }
  func.func @transform_0(%arg0: i32) -> (i32, i32, i32) {
    %c0_i32 = arith.constant 0 : i32
    %c0_i32_0 = arith.constant 0 : i32
    %c0_i32_1 = arith.constant 0 : i32
    return %arg0, %c0_i32, %c0_i32_0 : i32, i32, i32
  }
  func.func @transform_1(%arg0: i32) -> (i32, i32) {
    %c0_i32 = arith.constant 0 : i32
    %c0_i32_0 = arith.constant 0 : i32
    %c0_i32_1 = arith.constant 0 : i32
    return %c0_i32, %c0_i32_0 : i32, i32
  }
  func.func @transform_2(%arg0: i32) -> (i32, i32) {
    %c0_i32 = arith.constant 0 : i32
    %c0_i32_0 = arith.constant 0 : i32
    %c0_i32_1 = arith.constant 0 : i32
    return %c0_i32, %c0_i32_0 : i32, i32
  }
  func.func @transform_3(%arg0: i32) -> (i32, i32) {
    %c0_i32 = arith.constant 0 : i32
    %c0_i32_0 = arith.constant 0 : i32
    %c0_i32_1 = arith.constant 0 : i32
    return %c0_i32, %c0_i32_0 : i32, i32
  }
  func.func @transform_4(%arg0: i32) -> (i32, i32, i32) {
    %c0_i32 = arith.constant 0 : i32
    %c0_i32_0 = arith.constant 0 : i32
    %c0_i32_1 = arith.constant 0 : i32
    return %arg0, %c0_i32, %c0_i32_0 : i32, i32, i32
  }
}

module attributes {stable_mosaic.version = 11 : i64} {
  func.func @_head_kernel(%arg0: i32, %arg1: memref<2x128xf32, #tpu.memory_space<vmem>>, %arg2: memref<128x512xf32, #tpu.memory_space<vmem>>, %arg3: memref<1x512xf32, #tpu.memory_space<vmem>>, %arg4: memref<2x512xf32, #tpu.memory_space<vmem>>) attributes {dimension_semantics = [#tpu.dimension_semantics<arbitrary>], iteration_bounds = array<i64: 1>, scalar_prefetch = 0 : i64, scratch_operands = 0 : i64, tpu.core_type = #tpu.core_type<tc>, window_params = [{pipeline_mode = #tpu.pipeline_mode<synchronous>, transform_indices = @transform_0, window_bounds = array<i64: 2, 128>}, {pipeline_mode = #tpu.pipeline_mode<synchronous>, transform_indices = @transform_1, window_bounds = array<i64: 128, 512>}, {pipeline_mode = #tpu.pipeline_mode<synchronous>, transform_indices = @transform_2, window_bounds = array<i64: 1, 512>}, {pipeline_mode = #tpu.pipeline_mode<synchronous>, transform_indices = @transform_3, window_bounds = array<i64: 2, 512>}]} {
    %c0 = arith.constant 0 : index
    %c0_0 = arith.constant 0 : index
    %0 = vector.load %arg1[%c0, %c0_0] : memref<2x128xf32, #tpu.memory_space<vmem>>, vector<2x128xf32>
    %c0_1 = arith.constant 0 : index
    %c0_2 = arith.constant 0 : index
    %1 = vector.load %arg2[%c0_1, %c0_2] : memref<128x512xf32, #tpu.memory_space<vmem>>, vector<128x512xf32>
    %cst = arith.constant dense<0.000000e+00> : vector<2x512xf32>
    %2 = tpu.matmul %0, %1, %cst {dimension_numbers = #tpu.dot_dimension_numbers<[1], [0], [0], [1], [0, 0, 1, 1], [], []>} : vector<2x128xf32>, vector<128x512xf32>, vector<2x512xf32> -> vector<2x512xf32>
    %c0_3 = arith.constant 0 : index
    %c0_4 = arith.constant 0 : index
    %3 = vector.load %arg3[%c0_3, %c0_4] : memref<1x512xf32, #tpu.memory_space<vmem>>, vector<1x512xf32>
    %4 = vector.broadcast %3 : vector<1x512xf32> to vector<2x512xf32>
    %5 = arith.addf %2, %4 : vector<2x512xf32>
    %6 = arith.mulf %5, %5 : vector<2x512xf32>
    %cst_5 = arith.constant dense<0.000000e+00> : vector<2xf32>
    %7 = vector.multi_reduction <add>, %6, %cst_5 [1] : vector<2x512xf32> to vector<2xf32>
    %8 = vector.shape_cast %7 : vector<2xf32> to vector<2x1xf32>
    %cst_6 = arith.constant 1.000000e-24 : f32
    %9 = vector.broadcast %cst_6 : f32 to vector<2x1xf32>
    %10 = arith.maximumf %8, %9 : vector<2x1xf32>
    %11 = math.rsqrt %10 : vector<2x1xf32>
    %12 = vector.broadcast %11 : vector<2x1xf32> to vector<2x512xf32>
    %13 = arith.mulf %5, %12 : vector<2x512xf32>
    %c0_7 = arith.constant 0 : index
    %c0_8 = arith.constant 0 : index
    %14 = vector.load %arg4[%c0_7, %c0_8] : memref<2x512xf32, #tpu.memory_space<vmem>>, vector<2x512xf32>
    tpu.vector_store %arg4[%c0_7, %c0_8], %13 {strides = array<i32>} : memref<2x512xf32, #tpu.memory_space<vmem>>, vector<2x512xf32>,
    return
  }
  func.func @transform_0(%arg0: i32) -> (i32, i32) {
    %c0_i32 = arith.constant 0 : i32
    %c0_i32_0 = arith.constant 0 : i32
    %c0_i32_1 = arith.constant 0 : i32
    return %c0_i32, %c0_i32_0 : i32, i32
  }
  func.func @transform_1(%arg0: i32) -> (i32, i32) {
    %c0_i32 = arith.constant 0 : i32
    %c0_i32_0 = arith.constant 0 : i32
    %c0_i32_1 = arith.constant 0 : i32
    return %c0_i32, %c0_i32_0 : i32, i32
  }
  func.func @transform_2(%arg0: i32) -> (i32, i32) {
    %c0_i32 = arith.constant 0 : i32
    %c0_i32_0 = arith.constant 0 : i32
    %c0_i32_1 = arith.constant 0 : i32
    return %c0_i32, %c0_i32_0 : i32, i32
  }
  func.func @transform_3(%arg0: i32) -> (i32, i32) {
    %c0_i32 = arith.constant 0 : i32
    %c0_i32_0 = arith.constant 0 : i32
    %c0_i32_1 = arith.constant 0 : i32
    return %c0_i32, %c0_i32_0 : i32, i32
  }
}

</mosaic_0001>

<llo_original>
// kernel: visual_encoder_forward.3
$region0: #{visual_encoder_forward.3}
  #allocation0 [shape = 'u32[]', space=smem, size = 0x4, offset = 0x4, fixed_abs, tag = 'smem constant byte address 0x4 - core index']
  #allocation1 [shape = 'u32[144,128]{1,0:T(1,128)}', space=vmem, size = 0x12000, scoped, tag = 'internal scratch']
  %s0 = inlined_call_operand.vmem [shape: f32[2,128], index: 0, kind: input, shape index: {}]
  %s1 = inlined_call_operand.vmem [shape: f32[128,512], index: 1, kind: input, shape index: {}]
  %s2 = inlined_call_operand.vmem [shape: f32[1,512], index: 2, kind: input, shape index: {}]
  %s3 = inlined_call_operand.hbm [shape: f32[2,512], index: 3, kind: output, shape index: {}]
  %s4 = sld [smem:[#allocation0]]
  $region22: #{visual_encoder_forward.3} parent=0
    _
  %s6 = ssub.s32 1, %s4
  %s7 = scalar_select 0, %s6, %s4
  $region1: #{visual_encoder_forward.3} parent=0
    #allocation2 [shape = 'u8[4096]{0}', space=vmem, size = 0x1000, scoped, tag = 'output window, operand 0, single buffered']
    #allocation3 [shape = 's32[1]{0}', space=sflag, size = 0x4, scoped, tag = 'scoped memory for visual_encoder_forward.3']
    %8 = vsyncpa [#allocation3], 0
    // Predicated region
    $region2: #{visual_encoder_forward.3} parent=1 // pred_check
      _
    $region3: #{visual_encoder_forward.3} parent=1 // pred_check_branch
      %10 = sbr.rel (0) target = $region5
    $region4: #{visual_encoder_forward.3} parent=1 // pred_region
      _
    $region5: #{visual_encoder_forward.3} parent=1 // pred_fallthru
      _
    // Predicated region
    $region6: #{visual_encoder_forward.3} parent=1 // pred_check
      _
    $region7: #{visual_encoder_forward.3} parent=1 // pred_check_branch
      %12 = sbr.rel (0) target = $region9
    $region8: #{visual_encoder_forward.3} parent=1 // pred_region
      _
    $region9: #{visual_encoder_forward.3} parent=1 // pred_fallthru
      _
    // Predicated region
    $region10: #{visual_encoder_forward.3} parent=1 // pred_check
      _
    $region11: #{visual_encoder_forward.3} parent=1 // pred_check_branch
      %14 = sbr.rel (0) target = $region13
    $region12: #{visual_encoder_forward.3} parent=1 // pred_region
      _
    $region13: #{visual_encoder_forward.3} parent=1 // pred_fallthru
      _
    %v15 = vld [vmem:[%s0] sm:$0x3]
    %v16 = vld [vmem:[%s1] sm:$0xff]
    %v17 = vld [vmem:[%s1 + $0x8] sm:$0xff]
    %v18 = vld [vmem:[%s1 + $0x10] sm:$0xff]
    %v19 = vld [vmem:[%s1 + $0x18] sm:$0xff]
    %v20 = vld [vmem:[%s1 + $0x20] sm:$0xff]
    %v21 = vld [vmem:[%s1 + $0x28] sm:$0xff]
    %v22 = vld [vmem:[%s1 + $0x30] sm:$0xff]
    %v23 = vld [vmem:[%s1 + $0x38] sm:$0xff]
    %v24 = vld [vmem:[%s1 + $0x40] sm:$0xff]
    %v25 = vld [vmem:[%s1 + $0x48] sm:$0xff]
    %v26 = vld [vmem:[%s1 + $0x50] sm:$0xff]
    %v27 = vld [vmem:[%s1 + $0x58] sm:$0xff]
    %v28 = vld [vmem:[%s1 + $0x60] sm:$0xff]
    %v29 = vld [vmem:[%s1 + $0x68] sm:$0xff]
    %v30 = vld [vmem:[%s1 + $0x70] sm:$0xff]
    %v31 = vld [vmem:[%s1 + $0x78] sm:$0xff]
    %v32 = vld [vmem:[%s1 + $0x80] sm:$0xff]
    %v33 = vld [vmem:[%s1 + $0x88] sm:$0xff]
    %v34 = vld [vmem:[%s1 + $0x90] sm:$0xff]
    %v35 = vld [vmem:[%s1 + $0x98] sm:$0xff]
    %v36 = vld [vmem:[%s1 + $0xa0] sm:$0xff]
    %v37 = vld [vmem:[%s1 + $0xa8] sm:$0xff]
    %v38 = vld [vmem:[%s1 + $0xb0] sm:$0xff]
    %v39 = vld [vmem:[%s1 + $0xb8] sm:$0xff]
    %v40 = vld [vmem:[%s1 + $0xc0] sm:$0xff]
    %v41 = vld [vmem:[%s1 + $0xc8] sm:$0xff]
    %v42 = vld [vmem:[%s1 + $0xd0] sm:$0xff]
    %v43 = vld [vmem:[%s1 + $0xd8] sm:$0xff]
    %v44 = vld [vmem:[%s1 + $0xe0] sm:$0xff]
    %v45 = vld [vmem:[%s1 + $0xe8] sm:$0xff]
    %v46 = vld [vmem:[%s1 + $0xf0] sm:$0xff]
    %v47 = vld [vmem:[%s1 + $0xf8] sm:$0xff]
    %v48 = vld [vmem:[%s1 + $0x100] sm:$0xff]
    %v49 = vld [vmem:[%s1 + $0x108] sm:$0xff]
    %v50 = vld [vmem:[%s1 + $0x110] sm:$0xff]
    %v51 = vld [vmem:[%s1 + $0x118] sm:$0xff]
    %v52 = vld [vmem:[%s1 + $0x120] sm:$0xff]
    %v53 = vld [vmem:[%s1 + $0x128] sm:$0xff]
    %v54 = vld [vmem:[%s1 + $0x130] sm:$0xff]
    %v55 = vld [vmem:[%s1 + $0x138] sm:$0xff]
    %v56 = vld [vmem:[%s1 + $0x140] sm:$0xff]
    %v57 = vld [vmem:[%s1 + $0x148] sm:$0xff]
    %v58 = vld [vmem:[%s1 + $0x150] sm:$0xff]
    %v59 = vld [vmem:[%s1 + $0x158] sm:$0xff]
    %v60 = vld [vmem:[%s1 + $0x160] sm:$0xff]
    %v61 = vld [vmem:[%s1 + $0x168] sm:$0xff]
    %v62 = vld [vmem:[%s1 + $0x170] sm:$0xff]
    %v63 = vld [vmem:[%s1 + $0x178] sm:$0xff]
    %v64 = vld [vmem:[%s1 + $0x180] sm:$0xff]
    %v65 = vld [vmem:[%s1 + $0x188] sm:$0xff]
    %v66 = vld [vmem:[%s1 + $0x190] sm:$0xff]
    %v67 = vld [vmem:[%s1 + $0x198] sm:$0xff]
    %v68 = vld [vmem:[%s1 + $0x1a0] sm:$0xff]
    %v69 = vld [vmem:[%s1 + $0x1a8] sm:$0xff]
    %v70 = vld [vmem:[%s1 + $0x1b0] sm:$0xff]
    %v71 = vld [vmem:[%s1 + $0x1b8] sm:$0xff]
    %v72 = vld [vmem:[%s1 + $0x1c0] sm:$0xff]
    %v73 = vld [vmem:[%s1 + $0x1c8] sm:$0xff]
    %v74 = vld [vmem:[%s1 + $0x1d0] sm:$0xff]
    %v75 = vld [vmem:[%s1 + $0x1d8] sm:$0xff]
    %v76 = vld [vmem:[%s1 + $0x1e0] sm:$0xff]
    %v77 = vld [vmem:[%s1 + $0x1e8] sm:$0xff]
    %v78 = vld [vmem:[%s1 + $0x1f0] sm:$0xff]
    %v79 = vld [vmem:[%s1 + $0x1f8] sm:$0xff]
    %v80 = vld [vmem:[%s2] sm:$0xf]
    %v82 = vlaneseq
    %v83 = vshrl.u32 %v82, 7
    %v84 = vsub.s32 0, %v83
    %v85 = vrot.slane %v80, %v84
    %v86 = vlaneseq
    %v87 = vshrl.u32 %v86, 7
    %v88 = vsub.s32 1, %v87
    %v89 = vrot.slane %v80, %v88
    %v90 = vlaneseq
    %v91 = vshrl.u32 %v90, 7
    %v92 = vsub.s32 2, %v91
    %v93 = vrot.slane %v80, %v92
    %v94 = vlaneseq
    %v95 = vshrl.u32 %v94, 7
    %v96 = vsub.s32 3, %v95
    %v97 = vrot.slane %v80, %v96
    %102 = vmatprep.subr.mxu0 %v17
    %103 = vmatpush1.msra.mxu0 %v16
    %104 = vmatprep.subr.mxu0 %v21
    %105 = vmatpush1.msra.mxu0 %v20
    %106 = vmatprep.subr.mxu0 %v25
    %107 = vmatpush1.msra.mxu0 %v24
    %108 = vmatprep.subr.mxu0 %v29
    %109 = vmatpush1.msra.mxu0 %v28
    %110 = vmatprep.subr.mxu0 %v33
    %111 = vmatpush1.msra.mxu0 %v32
    %112 = vmatprep.subr.mxu0 %v37
    %113 = vmatpush1.msra.mxu0 %v36
    %114 = vmatprep.subr.mxu0 %v41
    %115 = vmatpush1.msra.mxu0 %v40
    %116 = vmatprep.subr.mxu0 %v45
    %117 = vmatpush1.msra.mxu0 %v44
    %118 = vmatprep.subr.mxu0 %v49
    %119 = vmatpush1.msra.mxu0 %v48
    %120 = vmatprep.subr.mxu0 %v53
    %121 = vmatpush1.msra.mxu0 %v52
    %122 = vmatprep.subr.mxu0 %v57
    %123 = vmatpush1.msra.mxu0 %v56
    %124 = vmatprep.subr.mxu0 %v61
    %125 = vmatpush1.msra.mxu0 %v60
    %126 = vmatprep.subr.mxu0 %v65
    %127 = vmatpush1.msra.mxu0 %v64
    %128 = vmatprep.subr.mxu0 %v69
    %129 = vmatpush1.msra.mxu0 %v68
    %130 = vmatprep.subr.mxu0 %v73
    %131 = vmatpush1.msra.mxu0 %v72
    %132 = vmatprep.subr.mxu0 %v77
    %133 = vmatpush1.msra.mxu0 %v76
    %134 = vmatprep.subr.mxu0 0.0
    %135 = vmatpush1.msra.mxu0 0.0
    %136 = vmatprep.subr.mxu0 0.0
    %137 = vmatpush1.msra.mxu0 0.0
    %138 = vmatprep.subr.mxu0 0.0
    %139 = vmatpush1.msra.mxu0 0.0
    %140 = vmatprep.subr.mxu0 0.0
    %141 = vmatpush1.msra.mxu0 0.0
    %142 = vmatprep.subr.mxu0 0.0
    %143 = vmatpush1.msra.mxu0 0.0
    %144 = vmatprep.subr.mxu0 0.0
    %145 = vmatpush1.msra.mxu0 0.0
    %146 = vmatprep.subr.mxu0 0.0
    %147 = vmatpush1.msra.mxu0 0.0
    %148 = vmatprep.subr.mxu0 0.0
    %149 = vmatpush1.msra.mxu0 0.0
    %150 = vmatprep.subr.mxu0 0.0
    %151 = vmatpush1.msra.mxu0 0.0
    %152 = vmatprep.subr.mxu0 0.0
    %153 = vmatpush1.msra.mxu0 0.0
    %154 = vmatprep.subr.mxu0 0.0
    %155 = vmatpush1.msra.mxu0 0.0
    %156 = vmatprep.subr.mxu0 0.0
    %157 = vmatpush1.msra.mxu0 0.0
    %158 = vmatprep.subr.mxu0 0.0
    %159 = vmatpush1.msra.mxu0 0.0
    %160 = vmatprep.subr.mxu0 0.0
    %161 = vmatpush1.msra.mxu0 0.0
    %162 = vmatprep.subr.mxu0 0.0
    %163 = vmatpush1.msra.mxu0 0.0
    %164 = vmatprep.subr.mxu0 0.0
    %165 = vmatpush1.msra.mxu0 0.0
    %166 = vmatprep.mubr.f32.mxu0 0.0
    %167 = vmatmul.mubr.f32.gmra.mrb[0].mxu0 %v15
    %v168 = vpop.f32.mrb[0].mxu0
    %v169 = vadd.f32 %v85, %v168
    %v170 = vpop.f32.mrb[0].mxu0
    %v171 = vadd.f32 %v89, %v170
    %172 = vdwg.mxu0
    %173 = vmatprep.subr.mxu0 %v19
    %174 = vmatpush1.msra.mxu0 %v18
    %175 = vmatprep.subr.mxu0 %v23
    %176 = vmatpush1.msra.mxu0 %v22
    %177 = vmatprep.subr.mxu0 %v27
    %178 = vmatpush1.msra.mxu0 %v26
    %179 = vmatprep.subr.mxu0 %v31
    %180 = vmatpush1.msra.mxu0 %v30
    %181 = vmatprep.subr.mxu0 %v35
    %182 = vmatpush1.msra.mxu0 %v34
    %183 = vmatprep.subr.mxu0 %v39
    %184 = vmatpush1.msra.mxu0 %v38
    %185 = vmatprep.subr.mxu0 %v43
    %186 = vmatpush1.msra.mxu0 %v42
    %187 = vmatprep.subr.mxu0 %v47
    %188 = vmatpush1.msra.mxu0 %v46
    %189 = vmatprep.subr.mxu0 %v51
    %190 = vmatpush1.msra.mxu0 %v50
    %191 = vmatprep.subr.mxu0 %v55
    %192 = vmatpush1.msra.mxu0 %v54
    %193 = vmatprep.subr.mxu0 %v59
    %194 = vmatpush1.msra.mxu0 %v58
    %195 = vmatprep.subr.mxu0 %v63
    %196 = vmatpush1.msra.mxu0 %v62
    %197 = vmatprep.subr.mxu0 %v67
    %198 = vmatpush1.msra.mxu0 %v66
    %199 = vmatprep.subr.mxu0 %v71
    %200 = vmatpush1.msra.mxu0 %v70
    %201 = vmatprep.subr.mxu0 %v75
    %202 = vmatpush1.msra.mxu0 %v74
    %203 = vmatprep.subr.mxu0 %v79
    %204 = vmatpush1.msra.mxu0 %v78
    %205 = vmatprep.subr.mxu0 0.0
    %206 = vmatpush1.msra.mxu0 0.0
    %207 = vmatprep.subr.mxu0 0.0
    %208 = vmatpush1.msra.mxu0 0.0
    %209 = vmatprep.subr.mxu0 0.0
    %210 = vmatpush1.msra.mxu0 0.0
    %211 = vmatprep.subr.mxu0 0.0
    %212 = vmatpush1.msra.mxu0 0.0
    %213 = vmatprep.subr.mxu0 0.0
    %214 = vmatpush1.msra.mxu0 0.0
    %215 = vmatprep.subr.mxu0 0.0
    %216 = vmatpush1.msra.mxu0 0.0
    %217 = vmatprep.subr.mxu0 0.0
    %218 = vmatpush1.msra.mxu0 0.0
    %219 = vmatprep.subr.mxu0 0.0
    %220 = vmatpush1.msra.mxu0 0.0
    %221 = vmatprep.subr.mxu0 0.0
    %222 = vmatpush1.msra.mxu0 0.0
    %223 = vmatprep.subr.mxu0 0.0
    %224 = vmatpush1.msra.mxu0 0.0
    %225 = vmatprep.subr.mxu0 0.0
    %226 = vmatpush1.msra.mxu0 0.0
    %227 = vmatprep.subr.mxu0 0.0
    %228 = vmatpush1.msra.mxu0 0.0
    %229 = vmatprep.subr.mxu0 0.0
    %230 = vmatpush1.msra.mxu0 0.0
    %231 = vmatprep.subr.mxu0 0.0
    %232 = vmatpush1.msra.mxu0 0.0
    %233 = vmatprep.subr.mxu0 0.0
    %234 = vmatpush1.msra.mxu0 0.0
    %235 = vmatprep.subr.mxu0 0.0
    %236 = vmatpush1.msra.mxu0 0.0
    %237 = vmatprep.mubr.f32.mxu0 0.0
    %238 = vmatmul.mubr.f32.gmra.mrb[0].mxu0 %v15
    %v239 = vpop.f32.mrb[0].mxu0
    %v240 = vadd.f32 %v93, %v239
    %v241 = vpop.f32.mrb[0].mxu0
    %v242 = vadd.f32 %v97, %v241
    %243 = vdwg.mxu0
    %v244 = vmul.f32 %v169, %v169
    %v245 = vmul.f32 %v171, %v171
    %v246 = vmul.f32 %v240, %v240
    %v247 = vmul.f32 %v242, %v242
    %vm248 = vcmask 1041408
    %v249 = vsel %vm248, %v244, 0.0
    %v250 = vsel %vm248, %v245, 0.0
    %v251 = vadd.f32 %v249, %v250
    %v252 = vsel %vm248, %v246, 0.0
    %v253 = vadd.f32 %v251, %v252
    %v254 = vsel %vm248, %v247, 0.0
    %v255 = vadd.f32 %v253, %v254
    %256 = vadd.xlane.f32.xlu0 %v255
    %v257 = vpop.xlane.xlu0 %256
    %v258 = vmax.f32 %v257, 1e-24
    %v259 = vrsqrt.pop %v258
    %v260 = vmul.f32 %v169, %v259
    %v261 = vmul.f32 %v171, %v259
    %v262 = vmul.f32 %v240, %v259
    %v263 = vmul.f32 %v242, %v259
    %v268 = vcombine.low %v260, %v261
    %v269 = vcombine.low %v262, %v263
    %v271 = vunpack.c.l.s4 1983009808
    %v272 = vunpack.c.0.s8 %v271
    %v273 = vlaneseq
    %v274 = vshrl.u32 %v273, 7
    %v275 = vsub.s32 %v272, %v274
    %v276 = vrot.slane %v268, %v275
    %v278 = vunpack.c.l.s4 1983009808
    %v279 = vunpack.c.0.s8 %v278
    %v280 = vlaneseq
    %v281 = vshrl.u32 %v280, 7
    %v282 = vsub.s32 %v279, %v281
    %v283 = vrot.slane %v269, %v282
    %v284 = vcombine.low %v276, %v283
    %286 = vst [vmem:[#allocation2] sm:$0xff] %v284
    // Predicated region
    $region14: #{visual_encoder_forward.3} parent=1 // pred_check
      _
    $region15: #{visual_encoder_forward.3} parent=1 // pred_check_branch
      %288 = sbr.rel (0) target = $region17
    $region16: #{visual_encoder_forward.3} parent=1 // pred_region
      %s290 = ssub.s32 128, 128
      %291 = vsyncadd [#allocation3], %s290
      %s293 = sshll.u32 [#allocation2], 4
      %s294 = int_to_ptr.vmem [resolvable:$true] %s293
      %296 = dma.vmem_to_hbm [thread:$0]  %s294, 128, %s3, [#allocation3]
    $region17: #{visual_encoder_forward.3} parent=1 // pred_fallthru
      _
    // Predicated region
    $region18: #{visual_encoder_forward.3} parent=1 // pred_check
      _
    $region19: #{visual_encoder_forward.3} parent=1 // pred_check_branch
      %298 = sbr.rel (0) target = $region21
    $region20: #{visual_encoder_forward.3} parent=1 // pred_region
      %299 = dma.done [#allocation3], 128
    $region21: #{visual_encoder_forward.3} parent=1 // pred_fallthru
      _
    %300 = vsyncpa [#allocation3], 1

// kernel: visual_encoder_forward.2
$region0: #{visual_encoder_forward.2}
  #allocation0 [shape = 'u32[]', space=smem, size = 0x4, offset = 0x4, fixed_abs, tag = 'smem constant byte address 0x4 - core index']
  #allocation1 [shape = 'u32[144,128]{1,0:T(1,128)}', space=vmem, size = 0x12000, scoped, tag = 'internal scratch']
  #allocation2 [shape = 'f32[3,290]{1,0:T(4,128)}', space=vmem, size = 0x1800, scoped, tag = 'scratch operand']
  %s0 = inlined_call_operand.vmem [shape: f32[2,3,256], index: 0, kind: input, shape index: {}]
  %s1 = inlined_call_operand.vmem [shape: f32[128,32], index: 1, kind: input, shape index: {}]
  %s2 = inlined_call_operand.vmem [shape: f32[128,1], index: 2, kind: input, shape index: {}]
  %s3 = inlined_call_operand.vmem [shape: f32[32,256], index: 3, kind: input, shape index: {}]
  %s4 = inlined_call_operand.vmem [shape: f32[2,128,1], index: 4, kind: output, shape index: {}]
  %s5 = sld [smem:[#allocation0]]
  $region49: #{visual_encoder_forward.2} parent=0
    _
  %s7 = ssub.s32 1, %s5
  %s8 = scalar_select 0, %s7, %s5
  loop: start=0, step=1, limit=4
  $region2: #{visual_encoder_forward.2} parent=0 // loop_pre_header
    _
  $region3: #{visual_encoder_forward.2} parent=0 // loop_header
    %s10 = sphi 0, %s14
    %p11 = scmp.ge.s32.totalorder %s10, 4
    %s20 = sphi 0, %s22
    %s23 = sphi 0, %s20
    %s24 = sphi 0, %s23
    %s40 = sphi 0, %s24
    %s44 = sphi 0, %s44
    %s46 = sphi 0, %s44
    %s47 = sphi 0, %s46
    %s61 = sphi 0, %s47
    %s65 = sphi 0, %s65
    %s67 = sphi 0, %s65
    %s68 = sphi 0, %s67
    %s82 = sphi 0, %s68
    %s86 = sphi 0, %s86
    %s88 = sphi 0, %s86
    %s89 = sphi 0, %s88
    %s103 = sphi 0, %s89
    %s109 = sphi 0, %s111
    %s112 = sphi 0, %s109
    %s113 = sphi 0, %s112
    %s129 = sphi 0, %s113
  $region4: #{visual_encoder_forward.2} parent=0 // loop_header_branch
    %13 = sbr.rel (%p11) target = $region8
  $region5: #{visual_encoder_forward.2} parent=0 // loop_body
    %s15 = ssub.s32 %s10, 1
    %s16 = ssub.s32 %s10, 2
    %s17 = sadd.s32 %s10, 1
    %s18 = ssub.s32 %s10, %s17
    %p19 = scmp.eq.s32.totalorder %s18, 0
    %s21 = sadd.s32 %s20, 1
    %s22 = scalar_select %p19, %s20, %s21
    %p25 = pneg %p19
    %p26 = scmp.eq.s32.totalorder %s10, 1
    %p27 = por %p25, %p26
    %p28 = scmp.ne.s32.totalorder %s20, %s23
    %p29 = scmp.eq.s32.totalorder %s10, 0
    %p30 = por %p28, %p29
    %p31 = scmp.ne.s32.totalorder %s20, %s23
    %p32 = scmp.eq.s32.totalorder %s15, 1
    %p33 = por %p31, %p32
    %p34 = scmp.ne.s32.totalorder %s23, %s24
    %p35 = scmp.eq.s32.totalorder %s15, 0
    %p36 = por %p34, %p35
    %p37 = scmp.ne.s32.totalorder %s23, %s24
    %p38 = scmp.eq.s32.totalorder %s16, 1
    %p39 = por %p37, %p38
    %p41 = scmp.ne.s32.totalorder %s24, %s40
    %p42 = scmp.eq.s32.totalorder %s16, 0
    %p43 = por %p41, %p42
    %s45 = sadd.s32 %s44, 1
    %p48 = scmp.eq.s32.totalorder %s10, 1
    %p49 = scmp.ne.s32.totalorder %s44, %s46
    %p50 = scmp.eq.s32.totalorder %s10, 0
    %p51 = por %p49, %p50
    %p52 = scmp.ne.s32.totalorder %s44, %s46
    %p53 = scmp.eq.s32.totalorder %s15, 1
    %p54 = por %p52, %p53
    %p55 = scmp.ne.s32.totalorder %s46, %s47
    %p56 = scmp.eq.s32.totalorder %s15, 0
    %p57 = por %p55, %p56
    %p58 = scmp.ne.s32.totalorder %s46, %s47
    %p59 = scmp.eq.s32.totalorder %s16, 1
    %p60 = por %p58, %p59
    %p62 = scmp.ne.s32.totalorder %s47, %s61
    %p63 = scmp.eq.s32.totalorder %s16, 0
    %p64 = por %p62, %p63
    %s66 = sadd.s32 %s65, 1
    %p69 = scmp.eq.s32.totalorder %s10, 1
    %p70 = scmp.ne.s32.totalorder %s65, %s67
    %p71 = scmp.eq.s32.totalorder %s10, 0
    %p72 = por %p70, %p71
    %p73 = scmp.ne.s32.totalorder %s65, %s67
    %p74 = scmp.eq.s32.totalorder %s15, 1
    %p75 = por %p73, %p74
    %p76 = scmp.ne.s32.totalorder %s67, %s68
    %p77 = scmp.eq.s32.totalorder %s15, 0
    %p78 = por %p76, %p77
    %p79 = scmp.ne.s32.totalorder %s67, %s68
    %p80 = scmp.eq.s32.totalorder %s16, 1
    %p81 = por %p79, %p80
    %p83 = scmp.ne.s32.totalorder %s68, %s82
    %p84 = scmp.eq.s32.totalorder %s16, 0
    %p85 = por %p83, %p84
    %s87 = sadd.s32 %s86, 1
    %p90 = scmp.eq.s32.totalorder %s10, 1
    %p91 = scmp.ne.s32.totalorder %s86, %s88
    %p92 = scmp.eq.s32.totalorder %s10, 0
    %p93 = por %p91, %p92
    %p94 = scmp.ne.s32.totalorder %s86, %s88
    %p95 = scmp.eq.s32.totalorder %s15, 1
    %p96 = por %p94, %p95
    %p97 = scmp.ne.s32.totalorder %s88, %s89
    %p98 = scmp.eq.s32.totalorder %s15, 0
    %p99 = por %p97, %p98
    %p100 = scmp.ne.s32.totalorder %s88, %s89
    %p101 = scmp.eq.s32.totalorder %s16, 1
    %p102 = por %p100, %p101
    %p104 = scmp.ne.s32.totalorder %s89, %s103
    %p105 = scmp.eq.s32.totalorder %s16, 0
    %p106 = por %p104, %p105
    %s107 = ssub.s32 %s10, %s17
    %p108 = scmp.eq.s32.totalorder %s107, 0
    %s110 = sadd.s32 %s109, 1
    %s111 = scalar_select %p108, %s109, %s110
    %p114 = pneg %p108
    %p115 = scmp.eq.s32.totalorder %s10, 1
    %p116 = por %p114, %p115
    %p117 = scmp.ne.s32.totalorder %s109, %s112
    %p118 = scmp.eq.s32.totalorder %s10, 0
    %p119 = por %p117, %p118
    %p120 = scmp.ne.s32.totalorder %s109, %s112
    %p121 = scmp.eq.s32.totalorder %s15, 1
    %p122 = por %p120, %p121
    %p123 = scmp.ne.s32.totalorder %s112, %s113
    %p124 = scmp.eq.s32.totalorder %s15, 0
    %p125 = por %p123, %p124
    %p126 = scmp.ne.s32.totalorder %s112, %s113
    %p127 = scmp.eq.s32.totalorder %s16, 1
    %p128 = por %p126, %p127
    %p130 = scmp.ne.s32.totalorder %s113, %s129
    %p131 = scmp.eq.s32.totalorder %s16, 0
    %p132 = por %p130, %p131
    %p133 = scmp.le.s32.totalorder 1, %s10
    %p134 = scmp.lt.s32.totalorder %s10, 3
    %p135 = pnand %p133, %p134
    %p136 = pneg %p135
    // Predicated region
    $region9: #{visual_encoder_forward.2} parent=5 // pred_check
      _
    $region10: #{visual_encoder_forward.2} parent=5 // pred_check_branch
      %138 = sbr.rel (%p135) target = $region12
    $region11: #{visual_encoder_forward.2} parent=5 // pred_region
      %s139 = ssub.s32 %s10, 1
      // Predicated region
      $region13: #{visual_encoder_forward.2} parent=11 // pred_check
        %p140 = pneg %p57
      $region14: #{visual_encoder_forward.2} parent=11 // pred_check_branch
        %142 = sbr.rel (%p140) target = $region16
      $region15: #{visual_encoder_forward.2} parent=11 // pred_region
        _
      $region16: #{visual_encoder_forward.2} parent=11 // pred_fallthru
        _
      // Predicated region
      $region17: #{visual_encoder_forward.2} parent=11 // pred_check
        %p143 = pneg %p78
      $region18: #{visual_encoder_forward.2} parent=11 // pred_check_branch
        %145 = sbr.rel (%p143) target = $region20
      $region19: #{visual_encoder_forward.2} parent=11 // pred_region
        _
      $region20: #{visual_encoder_forward.2} parent=11 // pred_fallthru
        _
      // Predicated region
      $region21: #{visual_encoder_forward.2} parent=11 // pred_check
        %p146 = pneg %p99
      $region22: #{visual_encoder_forward.2} parent=11 // pred_check_branch
        %148 = sbr.rel (%p146) target = $region24
      $region23: #{visual_encoder_forward.2} parent=11 // pred_region
        _
      $region24: #{visual_encoder_forward.2} parent=11 // pred_fallthru
        _
    $region12: #{visual_encoder_forward.2} parent=5 // pred_fallthru
      _
    %p149 = scmp.lt.s32.totalorder %s10, 2
    // Predicated region
    $region25: #{visual_encoder_forward.2} parent=5 // pred_check
      %p150 = pneg %p149
    $region26: #{visual_encoder_forward.2} parent=5 // pred_check_branch
      %152 = sbr.rel (%p150) target = $region28
    $region27: #{visual_encoder_forward.2} parent=5 // pred_region
      // Predicated region
      $region29: #{visual_encoder_forward.2} parent=27 // pred_check
        %p153 = pneg %p30
      $region30: #{visual_encoder_forward.2} parent=27 // pred_check_branch
        %155 = sbr.rel (%p153) target = $region32
      $region31: #{visual_encoder_forward.2} parent=27 // pred_region
        %p156 = scmp.lt.s32.totalorder %s10, 1
        %s157 = scalar_select %p156, %s10, 1
        %s158 = smul.addr %s157, 2
        %s159 = smul.addr %s158, 4
        %s160 = scalar_lea.vmem %s0, %s159
      $region32: #{visual_encoder_forward.2} parent=27 // pred_fallthru
        _
    $region28: #{visual_encoder_forward.2} parent=5 // pred_fallthru
      _
    %p161 = scmp.le.s32.totalorder 1, %s10
    %p162 = scmp.lt.s32.totalorder %s10, 3
    %p163 = pnand %p161, %p162
    %p164 = pneg %p163
    // Predicated region
    $region33: #{visual_encoder_forward.2} parent=5 // pred_check
      _
    $region34: #{visual_encoder_forward.2} parent=5 // pred_check_branch
      %166 = sbr.rel (%p163) target = $region36
    $region35: #{visual_encoder_forward.2} parent=5 // pred_region
      %s167 = ssub.s32 %s10, 1
      %p168 = scmp.lt.s32.totalorder %s15, 1
      %s169 = scalar_select %p168, %s15, 1
      %s170 = smul.addr %s169, 2
      %s171 = smul.addr %s170, 4
      %s172 = scalar_lea.vmem %s0, %s171
      %p173 = pneg %p36
      %p174 = pneg %p33
      %p175 = pneg %p57
      %p176 = pneg %p54
      %p177 = pneg %p78
      %p178 = pneg %p75
      %p179 = pneg %p99
      %p180 = pneg %p96
      %p181 = pneg %p125
      %p182 = pneg %p122
      %p183 = scmp.lt.s32.totalorder %s15, 1
      %s184 = scalar_select %p183, %s15, 1
      %s185 = smul.addr %s184, 16
      %s186 = smul.addr %s185, 8
      %s187 = scalar_lea.vmem %s4, %s186
      %p188 = scmp.lt.s32.totalorder %s15, 1
      %s189 = scalar_select %p188, %s15, 1
      %s190 = smul.addr %s189, 2
      %s191 = smul.addr %s190, 4
      %s192 = scalar_lea.vmem %s0, %s191
      %p193 = scmp.lt.s32.totalorder %s15, 1
      %s194 = scalar_select %p193, %s15, 1
      %s195 = smul.addr %s194, 16
      %s196 = smul.addr %s195, 8
      %s197 = scalar_lea.vmem %s4, %s196
      %vm198 = vcmask 133120
      %199 = vst.msk [vmem:[#allocation2] sm:$0x7] %vm198, 0.0
      %vm200 = vcmask 272520
      %201 = vst.msk [vmem:[#allocation2 + $0x8] sm:$0x7] %vm200, 0.0
      %v202 = vld [vmem:[%s192] sm:$0x77]
      %204 = vrot.lane.b32.xlu0 %v202, 17
      %v205 = vpop.permute.xlu0 %204
      %v206 = vrot.slane %v205, 4
      %vm207 = vcmask 138240
      %v208 = vsel %vm207, %v206, %v205
      %vm211 = vcmask 1042568
      %vm212 = vcmask 1046532
      %vm213 = vmor %vm212, %vm211
      %214 = vst.msk [vmem:[#allocation2] sm:$0x77] %vm213, %v208
      %215 = vst.msk [vmem:[#allocation2 + $0x8] sm:$0x7] %vm198, %v206
      %v216 = vld [vmem:[%s1] sm:$0xff]
      %v217 = vld [vmem:[%s1 + $0x8] sm:$0xff]
      %v218 = vld [vmem:[%s1 + $0x10] sm:$0xff]
      %v219 = vld [vmem:[%s1 + $0x18] sm:$0xff]
      %v220 = vld [vmem:[%s1 + $0x20] sm:$0xff]
      %v221 = vld [vmem:[%s1 + $0x28] sm:$0xff]
      %v222 = vld [vmem:[%s1 + $0x30] sm:$0xff]
      %v223 = vld [vmem:[%s1 + $0x38] sm:$0xff]
      %v224 = vld [vmem:[%s1 + $0x40] sm:$0xff]
      %v225 = vld [vmem:[%s1 + $0x48] sm:$0xff]
      %v226 = vld [vmem:[%s1 + $0x50] sm:$0xff]
      %v227 = vld [vmem:[%s1 + $0x58] sm:$0xff]
      %v228 = vld [vmem:[%s1 + $0x60] sm:$0xff]
      %v229 = vld [vmem:[%s1 + $0x68] sm:$0xff]
      %v230 = vld [vmem:[%s1 + $0x70] sm:$0xff]
      %v231 = vld [vmem:[%s1 + $0x78] sm:$0xff]
      %v232 = vld [vmem:[%s2] sm:$0xff]
      %v233 = vld [vmem:[%s2 + $0x8] sm:$0xff]
      %v234 = vld [vmem:[%s2 + $0x10] sm:$0xff]
      %v235 = vld [vmem:[%s2 + $0x18] sm:$0xff]
      %v236 = vld [vmem:[%s2 + $0x20] sm:$0xff]
      %v237 = vld [vmem:[%s2 + $0x28] sm:$0xff]
      %v238 = vld [vmem:[%s2 + $0x30] sm:$0xff]
      %v239 = vld [vmem:[%s2 + $0x38] sm:$0xff]
      %v240 = vld [vmem:[%s2 + $0x40] sm:$0xff]
      %v241 = vld [vmem:[%s2 + $0x48] sm:$0xff]
      %v242 = vld [vmem:[%s2 + $0x50] sm:$0xff]
      %v243 = vld [vmem:[%s2 + $0x58] sm:$0xff]
      %v244 = vld [vmem:[%s2 + $0x60] sm:$0xff]
      %v245 = vld [vmem:[%s2 + $0x68] sm:$0xff]
      %v246 = vld [vmem:[%s2 + $0x70] sm:$0xff]
      %v247 = vld [vmem:[%s2 + $0x78] sm:$0xff]
      %v248 = vld [vmem:[%s3] sm:$0xff]
      %v249 = vld [vmem:[%s3 + $0x8] sm:$0xff]
      %v250 = vld [vmem:[%s3 + $0x10] sm:$0xff]
      %v251 = vld [vmem:[%s3 + $0x18] sm:$0xff]
      %v252 = vld [vmem:[%s3 + $0x20] sm:$0xff]
      %v253 = vld [vmem:[%s3 + $0x28] sm:$0xff]
      %v254 = vld [vmem:[%s3 + $0x30] sm:$0xff]
      %v255 = vld [vmem:[%s3 + $0x38] sm:$0xff]
      %v256 = vld [vmem:[#allocation2] ss:$4 sm:$0x3]
      %s257 = scalar_lea.vmem [#allocation2], 1
      %v258 = vld [vmem:[%s257] ss:$4 sm:$0x3]
      %s259 = scalar_lea.vmem [#allocation2], 2
      %v260 = vld [vmem:[%s259] ss:$4 sm:$0x3]
      %v261 = vld [vmem:[#allocation2] ss:$4 sm:$0x7]
      %v262 = vld [vmem:[%s257] ss:$4 sm:$0x7]
      %v263 = vld [vmem:[%s259] ss:$4 sm:$0x7]
      %v265 = vlaneseq
      %v266 = vshrl.u32 %v265, 7
      %v267 = vsub.s32 0, %v266
      %v268 = vrot.slane %v256, %v267
      %v269 = vlaneseq
      %v270 = vshrl.u32 %v269, 7
      %v271 = vsub.s32 1, %v270
      %v272 = vrot.slane %v256, %v271
      %v276 = vlaneseq
      %v277 = vshrl.u32 %v276, 7
      %v278 = vsub.s32 0, %v277
      %v279 = vrot.slane %v258, %v278
      %v280 = vlaneseq
      %v281 = vshrl.u32 %v280, 7
      %v282 = vsub.s32 1, %v281
      %v283 = vrot.slane %v258, %v282
      %v287 = vlaneseq
      %v288 = vshrl.u32 %v287, 7
      %v289 = vsub.s32 0, %v288
      %v290 = vrot.slane %v260, %v289
      %v291 = vlaneseq
      %v292 = vshrl.u32 %v291, 7
      %v293 = vsub.s32 1, %v292
      %v294 = vrot.slane %v260, %v293
      %v298 = vlaneseq
      %v299 = vshrl.u32 %v298, 7
      %v300 = vsub.s32 0, %v299
      %v301 = vrot.slane %v261, %v300
      %v302 = vlaneseq
      %v303 = vshrl.u32 %v302, 7
      %v304 = vsub.s32 1, %v303
      %v305 = vrot.slane %v261, %v304
      %v306 = vlaneseq
      %v307 = vshrl.u32 %v306, 7
      %v308 = vsub.s32 2, %v307
      %v309 = vrot.slane %v261, %v308
      %310 = vrot.lane.b32.xlu0 %v301, 127
      %v311 = vpop.permute.xlu0 %310
      %312 = vrot.lane.b32.xlu0 %v305, 127
      %v313 = vpop.permute.xlu0 %312
      %314 = vrot.lane.b32.xlu0 %v309, 127
      %v315 = vpop.permute.xlu0 %314
      %vm316 = vcmask 1039360
      %v317 = vsel %vm316, %v311, %v313
      %v318 = vsel %vm316, %v313, %v315
      %v322 = vlaneseq
      %v323 = vshrl.u32 %v322, 7
      %v324 = vsub.s32 0, %v323
      %v325 = vrot.slane %v262, %v324
      %v326 = vlaneseq
      %v327 = vshrl.u32 %v326, 7
      %v328 = vsub.s32 1, %v327
      %v329 = vrot.slane %v262, %v328
      %v330 = vlaneseq
      %v331 = vshrl.u32 %v330, 7
      %v332 = vsub.s32 2, %v331
      %v333 = vrot.slane %v262, %v332
      %334 = vrot.lane.b32.xlu0 %v325, 127
      %v335 = vpop.permute.xlu0 %334
      %336 = vrot.lane.b32.xlu0 %v329, 127
      %v337 = vpop.permute.xlu0 %336
      %338 = vrot.lane.b32.xlu0 %v333, 127
      %v339 = vpop.permute.xlu0 %338
      %v340 = vsel %vm316, %v335, %v337
      %v341 = vsel %vm316, %v337, %v339
      %v345 = vlaneseq
      %v346 = vshrl.u32 %v345, 7
      %v347 = vsub.s32 0, %v346
      %v348 = vrot.slane %v263, %v347
      %v349 = vlaneseq
      %v350 = vshrl.u32 %v349, 7
      %v351 = vsub.s32 1, %v350
      %v352 = vrot.slane %v263, %v351
      %v353 = vlaneseq
      %v354 = vshrl.u32 %v353, 7
      %v355 = vsub.s32 2, %v354
      %v356 = vrot.slane %v263, %v355
      %357 = vrot.lane.b32.xlu0 %v348, 127
      %v358 = vpop.permute.xlu0 %357
      %359 = vrot.lane.b32.xlu0 %v352, 127
      %v360 = vpop.permute.xlu0 %359
      %361 = vrot.lane.b32.xlu0 %v356, 127
      %v362 = vpop.permute.xlu0 %361
      %v363 = vsel %vm316, %v358, %v360
      %v364 = vsel %vm316, %v360, %v362
      %367 = vrot.lane.b32.xlu0 %v301, 126
      %v368 = vpop.permute.xlu0 %367
      %369 = vrot.lane.b32.xlu0 %v305, 126
      %v370 = vpop.permute.xlu0 %369
      %371 = vrot.lane.b32.xlu0 %v309, 126
      %v372 = vpop.permute.xlu0 %371
      %vm373 = vcmask 1031168
      %v374 = vsel %vm373, %v368, %v370
      %v375 = vsel %vm373, %v370, %v372
      %378 = vrot.lane.b32.xlu0 %v325, 126
      %v379 = vpop.permute.xlu0 %378
      %380 = vrot.lane.b32.xlu0 %v329, 126
      %v381 = vpop.permute.xlu0 %380
      %382 = vrot.lane.b32.xlu0 %v333, 126
      %v383 = vpop.permute.xlu0 %382
      %v384 = vsel %vm373, %v379, %v381
      %v385 = vsel %vm373, %v381, %v383
      %388 = vrot.lane.b32.xlu0 %v348, 126
      %v389 = vpop.permute.xlu0 %388
      %390 = vrot.lane.b32.xlu0 %v352, 126
      %v391 = vpop.permute.xlu0 %390
      %392 = vrot.lane.b32.xlu0 %v356, 126
      %v393 = vpop.permute.xlu0 %392
      %v394 = vsel %vm373, %v389, %v391
      %v395 = vsel %vm373, %v391, %v393
      %398 = vrot.lane.b32.xlu0 %v301, 112
      %v399 = vpop.permute.xlu0 %398
      %400 = vrot.lane.b32.xlu0 %v305, 112
      %v401 = vpop.permute.xlu0 %400
      %402 = vrot.lane.b32.xlu0 %v309, 112
      %v403 = vpop.permute.xlu0 %402
      %vm404 = vcmask 916480
      %v405 = vsel %vm404, %v399, %v401
      %v406 = vsel %vm404, %v401, %v403
      %409 = vrot.lane.b32.xlu0 %v325, 112
      %v410 = vpop.permute.xlu0 %409
      %411 = vrot.lane.b32.xlu0 %v329, 112
      %v412 = vpop.permute.xlu0 %411
      %413 = vrot.lane.b32.xlu0 %v333, 112
      %v414 = vpop.permute.xlu0 %413
      %v415 = vsel %vm404, %v410, %v412
      %v416 = vsel %vm404, %v412, %v414
      %419 = vrot.lane.b32.xlu0 %v348, 112
      %v420 = vpop.permute.xlu0 %419
      %421 = vrot.lane.b32.xlu0 %v352, 112
      %v422 = vpop.permute.xlu0 %421
      %423 = vrot.lane.b32.xlu0 %v356, 112
      %v424 = vpop.permute.xlu0 %423
      %v425 = vsel %vm404, %v420, %v422
      %v426 = vsel %vm404, %v422, %v424
      %429 = vrot.lane.b32.xlu0 %v301, 111
      %v430 = vpop.permute.xlu0 %429
      %431 = vrot.lane.b32.xlu0 %v305, 111
      %v432 = vpop.permute.xlu0 %431
      %433 = vrot.lane.b32.xlu0 %v309, 111
      %v434 = vpop.permute.xlu0 %433
      %vm435 = vcmask 908288
      %v436 = vsel %vm435, %v430, %v432
      %v437 = vsel %vm435, %v432, %v434
      %440 = vrot.lane.b32.xlu0 %v325, 111
      %v441 = vpop.permute.xlu0 %440
      %442 = vrot.lane.b32.xlu0 %v329, 111
      %v443 = vpop.permute.xlu0 %442
      %444 = vrot.lane.b32.xlu0 %v333, 111
      %v445 = vpop.permute.xlu0 %444
      %v446 = vsel %vm435, %v441, %v443
      %v447 = vsel %vm435, %v443, %v445
      %450 = vrot.lane.b32.xlu0 %v348, 111
      %v451 = vpop.permute.xlu0 %450
      %452 = vrot.lane.b32.xlu0 %v352, 111
      %v453 = vpop.permute.xlu0 %452
      %454 = vrot.lane.b32.xlu0 %v356, 111
      %v455 = vpop.permute.xlu0 %454
      %v456 = vsel %vm435, %v451, %v453
      %v457 = vsel %vm435, %v453, %v455
      %460 = vrot.lane.b32.xlu0 %v301, 110
      %v461 = vpop.permute.xlu0 %460
      %462 = vrot.lane.b32.xlu0 %v305, 110
      %v463 = vpop.permute.xlu0 %462
      %464 = vrot.lane.b32.xlu0 %v309, 110
      %v465 = vpop.permute.xlu0 %464
      %vm466 = vcmask 900096
      %v467 = vsel %vm466, %v461, %v463
      %v468 = vsel %vm466, %v463, %v465
      %vm471 = vcmask 1040384
      %v472 = vsel %vm471, %v268, %v279
      %v473 = vsel %vm471, %v272, %v283
      %vm474 = vcmask 1041408
      %v475 = vsel %vm474, %v472, %v290
      %v476 = vsel %vm474, %v473, %v294
      %vm477 = vcmask 1042432
      %v478 = vsel %vm477, %v475, %v317
      %v479 = vsel %vm477, %v476, %v318
      %vm480 = vcmask 1043456
      %v481 = vsel %vm480, %v478, %v340
      %v482 = vsel %vm480, %v479, %v341
      %vm483 = vcmask 1044480
      %v484 = vsel %vm483, %v481, %v363
      %v485 = vsel %vm483, %v482, %v364
      %vm486 = vcmask 1045504
      %v487 = vsel %vm486, %v484, %v374
      %v488 = vsel %vm486, %v485, %v375
      %vm489 = vcmask 1046528
      %v490 = vsel %vm489, %v487, %v384
      %v491 = vsel %vm489, %v488, %v385
      %v492 = vsel %vm471, %v394, %v405
      %v493 = vsel %vm471, %v395, %v406
      %v494 = vsel %vm474, %v492, %v415
      %v495 = vsel %vm474, %v493, %v416
      %v496 = vsel %vm477, %v494, %v425
      %v497 = vsel %vm477, %v495, %v426
      %v498 = vsel %vm480, %v496, %v436
      %v499 = vsel %vm480, %v497, %v437
      %v500 = vsel %vm483, %v498, %v446
      %v501 = vsel %vm483, %v499, %v447
      %v502 = vsel %vm486, %v500, %v456
      %v503 = vsel %vm486, %v501, %v457
      %v504 = vsel %vm489, %v502, %v467
      %v505 = vsel %vm489, %v503, %v468
      %512 = vrot.lane.b32.xlu0 %v301, 114
      %v513 = vpop.permute.xlu0 %512
      %514 = vrot.lane.b32.xlu0 %v305, 114
      %v515 = vpop.permute.xlu0 %514
      %516 = vrot.lane.b32.xlu0 %v309, 114
      %v517 = vpop.permute.xlu0 %516
      %vm518 = vcmask 932864
      %v519 = vsel %vm518, %v513, %v515
      %v520 = vsel %vm518, %v515, %v517
      %524 = vrot.lane.b32.xlu0 %v325, 114
      %v525 = vpop.permute.xlu0 %524
      %526 = vrot.lane.b32.xlu0 %v329, 114
      %v527 = vpop.permute.xlu0 %526
      %528 = vrot.lane.b32.xlu0 %v333, 114
      %v529 = vpop.permute.xlu0 %528
      %v530 = vsel %vm518, %v525, %v527
      %v531 = vsel %vm518, %v527, %v529
      %535 = vrot.lane.b32.xlu0 %v348, 114
      %v536 = vpop.permute.xlu0 %535
      %537 = vrot.lane.b32.xlu0 %v352, 114
      %v538 = vpop.permute.xlu0 %537
      %539 = vrot.lane.b32.xlu0 %v356, 114
      %v540 = vpop.permute.xlu0 %539
      %v541 = vsel %vm518, %v536, %v538
      %v542 = vsel %vm518, %v538, %v540
      %546 = vrot.lane.b32.xlu0 %v301, 113
      %v547 = vpop.permute.xlu0 %546
      %548 = vrot.lane.b32.xlu0 %v305, 113
      %v549 = vpop.permute.xlu0 %548
      %550 = vrot.lane.b32.xlu0 %v309, 113
      %v551 = vpop.permute.xlu0 %550
      %vm552 = vcmask 924672
      %v553 = vsel %vm552, %v547, %v549
      %v554 = vsel %vm552, %v549, %v551
      %558 = vrot.lane.b32.xlu0 %v325, 113
      %v559 = vpop.permute.xlu0 %558
      %560 = vrot.lane.b32.xlu0 %v329, 113
      %v561 = vpop.permute.xlu0 %560
      %562 = vrot.lane.b32.xlu0 %v333, 113
      %v563 = vpop.permute.xlu0 %562
      %v564 = vsel %vm552, %v559, %v561
      %v565 = vsel %vm552, %v561, %v563
      %569 = vrot.lane.b32.xlu0 %v348, 113
      %v570 = vpop.permute.xlu0 %569
      %571 = vrot.lane.b32.xlu0 %v352, 113
      %v572 = vpop.permute.xlu0 %571
      %573 = vrot.lane.b32.xlu0 %v356, 113
      %v574 = vpop.permute.xlu0 %573
      %v575 = vsel %vm552, %v570, %v572
      %v576 = vsel %vm552, %v572, %v574
      %583 = vrot.lane.b32.xlu0 %v268, 18
      %v584 = vpop.permute.xlu0 %583
      %585 = vrot.lane.b32.xlu0 %v272, 18
      %v586 = vpop.permute.xlu0 %585
      %vm587 = vcmask 146432
      %v588 = vsel %vm587, %v584, %v586
      %v592 = vsel %vm471, %v325, %v348
      %v593 = vsel %vm471, %v329, %v352
      %v594 = vsel %vm471, %v333, %v356
      %v595 = vsel %vm474, %v592, %v519
      %v596 = vsel %vm474, %v593, %v520
      %v597 = vsel %vm474, %v594, %v517
      %v598 = vsel %vm477, %v595, %v530
      %v599 = vsel %vm477, %v596, %v531
      %v600 = vsel %vm477, %v597, %v529
      %v601 = vsel %vm480, %v598, %v541
      %v602 = vsel %vm480, %v599, %v542
      %v603 = vsel %vm480, %v600, %v540
      %v604 = vsel %vm483, %v601, %v553
      %v605 = vsel %vm483, %v602, %v554
      %v606 = vsel %vm483, %v603, %v551
      %v607 = vsel %vm486, %v604, %v564
      %v608 = vsel %vm486, %v605, %v565
      %v609 = vsel %vm486, %v606, %v563
      %v610 = vsel %vm489, %v607, %v575
      %v611 = vsel %vm489, %v608, %v576
      %v612 = vsel %vm489, %v609, %v574
      %v613 = vsel %vm471, %v405, %v415
      %v614 = vsel %vm471, %v406, %v416
      %v615 = vsel %vm471, %v403, %v414
      %v616 = vsel %vm474, %v613, %v425
      %v617 = vsel %vm474, %v614, %v426
      %v618 = vsel %vm474, %v615, %v424
      %v619 = vsel %vm477, %v616, %v584
      %v620 = vsel %vm477, %v617, %v588
      %v621 = vsel %vm477, %v618, %v586
      %v622 = vsel %vm480, %v619, %v584
      %v623 = vsel %vm480, %v620, %v588
      %v624 = vsel %vm480, %v621, %v586
      %v625 = vsel %vm483, %v622, %v584
      %v626 = vsel %vm483, %v623, %v588
      %v627 = vsel %vm483, %v624, %v586
      %v628 = vsel %vm486, %v625, %v584
      %v629 = vsel %vm486, %v626, %v588
      %v630 = vsel %vm486, %v627, %v586
      %v631 = vsel %vm489, %v628, %v584
      %v632 = vsel %vm489, %v629, %v588
      %v633 = vsel %vm489, %v630, %v586
      %640 = vrot.lane.b32.xlu0 %v610, 110
      %v641 = vpop.permute.xlu0 %640
      %642 = vrot.lane.b32.xlu0 %v611, 110
      %v643 = vpop.permute.xlu0 %642
      %644 = vrot.lane.b32.xlu0 %v612, 110
      %v645 = vpop.permute.xlu0 %644
      %646 = vrot.lane.b32.xlu0 %v631, 110
      %v647 = vpop.permute.xlu0 %646
      %648 = vrot.lane.b32.xlu0 %v632, 110
      %v649 = vpop.permute.xlu0 %648
      %650 = vrot.lane.b32.xlu0 %v633, 110
      %v651 = vpop.permute.xlu0 %650
      %v652 = vsel %vm466, %v641, %v643
      %v653 = vsel %vm466, %v643, %v645
      %v654 = vsel %vm466, %v647, %v649
      %v655 = vsel %vm466, %v649, %v651
      %v660 = vmul.f32 %v490, %v248
      %v661 = vmul.f32 %v491, %v249
      %v662 = vmul.f32 %v504, %v250
      %v663 = vmul.f32 %v505, %v251
      %v664 = vmul.f32 %v652, %v252
      %v665 = vmul.f32 %v653, %v253
      %v666 = vmul.f32 %v654, %v254
      %v667 = vmul.f32 %v655, %v255
      %669 = vset.pattern.permute.xlu0 0
      %670 = vperm.xlu0 %669, %v232
      %v671 = vpop.permute.xlu0 %670
      %674 = vset.pattern.permute.xlu0 0
      %675 = vperm.xlu0 %674, %v233
      %v676 = vpop.permute.xlu0 %675
      %679 = vset.pattern.permute.xlu0 0
      %680 = vperm.xlu0 %679, %v234
      %v681 = vpop.permute.xlu0 %680
      %684 = vset.pattern.permute.xlu0 0
      %685 = vperm.xlu0 %684, %v235
      %v686 = vpop.permute.xlu0 %685
      %689 = vset.pattern.permute.xlu0 0
      %690 = vperm.xlu0 %689, %v236
      %v691 = vpop.permute.xlu0 %690
      %694 = vset.pattern.permute.xlu0 0
      %695 = vperm.xlu0 %694, %v237
      %v696 = vpop.permute.xlu0 %695
      %699 = vset.pattern.permute.xlu0 0
      %700 = vperm.xlu0 %699, %v238
      %v701 = vpop.permute.xlu0 %700
      %704 = vset.pattern.permute.xlu0 0
      %705 = vperm.xlu0 %704, %v239
      %v706 = vpop.permute.xlu0 %705
      %709 = vset.pattern.permute.xlu0 0
      %710 = vperm.xlu0 %709, %v240
      %v711 = vpop.permute.xlu0 %710
      %714 = vset.pattern.permute.xlu0 0
      %715 = vperm.xlu0 %714, %v241
      %v716 = vpop.permute.xlu0 %715
      %719 = vset.pattern.permute.xlu0 0
      %720 = vperm.xlu0 %719, %v242
      %v721 = vpop.permute.xlu0 %720
      %724 = vset.pattern.permute.xlu0 0
      %725 = vperm.xlu0 %724, %v243
      %v726 = vpop.permute.xlu0 %725
      %729 = vset.pattern.permute.xlu0 0
      %730 = vperm.xlu0 %729, %v244
      %v731 = vpop.permute.xlu0 %730
      %734 = vset.pattern.permute.xlu0 0
      %735 = vperm.xlu0 %734, %v245
      %v736 = vpop.permute.xlu0 %735
      %739 = vset.pattern.permute.xlu0 0
      %740 = vperm.xlu0 %739, %v246
      %v741 = vpop.permute.xlu0 %740
      %744 = vset.pattern.permute.xlu0 0
      %745 = vperm.xlu0 %744, %v247
      %v746 = vpop.permute.xlu0 %745
      %vm748 = vcmask 261120
      %v750 = vsel %vm748, %v216, 0
      %v753 = vsel %vm748, %v217, 0
      %v756 = vsel %vm748, %v218, 0
      %v759 = vsel %vm748, %v219, 0
      %v762 = vsel %vm748, %v220, 0
      %v765 = vsel %vm748, %v221, 0
      %v768 = vsel %vm748, %v222, 0
      %v771 = vsel %vm748, %v223, 0
      %v774 = vsel %vm748, %v224, 0
      %v777 = vsel %vm748, %v225, 0
      %v780 = vsel %vm748, %v226, 0
      %v783 = vsel %vm748, %v227, 0
      %v786 = vsel %vm748, %v228, 0
      %v789 = vsel %vm748, %v229, 0
      %v792 = vsel %vm748, %v230, 0
      %v795 = vsel %vm748, %v231, 0
      %797 = vmatprep.subr.mxu0 %v661
      %798 = vmatpush1.msra.mxu0 %v660
      %799 = vmatprep.subr.mxu0 %v663
      %800 = vmatpush1.msra.mxu0 %v662
      %801 = vmatprep.subr.mxu0 %v665
      %802 = vmatpush1.msra.mxu0 %v664
      %803 = vmatprep.subr.mxu0 %v667
      %804 = vmatpush1.msra.mxu0 %v666
      %805 = vmatprep.subr.mxu0 0.0
      %806 = vmatpush1.msra.mxu0 0.0
      %807 = vmatprep.subr.mxu0 0.0
      %808 = vmatpush1.msra.mxu0 0.0
      %809 = vmatprep.subr.mxu0 0.0
      %810 = vmatpush1.msra.mxu0 0.0
      %811 = vmatprep.subr.mxu0 0.0
      %812 = vmatpush1.msra.mxu0 0.0
      %813 = vmatprep.subr.mxu0 0.0
      %814 = vmatpush1.msra.mxu0 0.0
      %815 = vmatprep.subr.mxu0 0.0
      %816 = vmatpush1.msra.mxu0 0.0
      %817 = vmatprep.subr.mxu0 0.0
      %818 = vmatpush1.msra.mxu0 0.0
      %819 = vmatprep.subr.mxu0 0.0
      %820 = vmatpush1.msra.mxu0 0.0
      %821 = vmatprep.subr.mxu0 0.0
      %822 = vmatpush1.msra.mxu0 0.0
      %823 = vmatprep.subr.mxu0 0.0
      %824 = vmatpush1.msra.mxu0 0.0
      %825 = vmatprep.subr.mxu0 0.0
      %826 = vmatpush1.msra.mxu0 0.0
      %827 = vmatprep.subr.mxu0 0.0
      %828 = vmatpush1.msra.mxu0 0.0
      %829 = vmatprep.subr.mxu0 0.0
      %830 = vmatpush1.msra.mxu0 0.0
      %831 = vmatprep.subr.mxu0 0.0
      %832 = vmatpush1.msra.mxu0 0.0
      %833 = vmatprep.subr.mxu0 0.0
      %834 = vmatpush1.msra.mxu0 0.0
      %835 = vmatprep.subr.mxu0 0.0
      %836 = vmatpush1.msra.mxu0 0.0
      %837 = vmatprep.subr.mxu0 0.0
      %838 = vmatpush1.msra.mxu0 0.0
      %839 = vmatprep.subr.mxu0 0.0
      %840 = vmatpush1.msra.mxu0 0.0
      %841 = vmatprep.subr.mxu0 0.0
      %842 = vmatpush1.msra.mxu0 0.0
      %843 = vmatprep.subr.mxu0 0.0
      %844 = vmatpush1.msra.mxu0 0.0
      %845 = vmatprep.subr.mxu0 0.0
      %846 = vmatpush1.msra.mxu0 0.0
      %847 = vmatprep.subr.mxu0 0.0
      %848 = vmatpush1.msra.mxu0 0.0
      %849 = vmatprep.subr.mxu0 0.0
      %850 = vmatpush1.msra.mxu0 0.0
      %851 = vmatprep.subr.mxu0 0.0
      %852 = vmatpush1.msra.mxu0 0.0
      %853 = vmatprep.subr.mxu0 0.0
      %854 = vmatpush1.msra.mxu0 0.0
      %855 = vmatprep.subr.mxu0 0.0
      %856 = vmatpush1.msra.mxu0 0.0
      %857 = vmatprep.subr.mxu0 0.0
      %858 = vmatpush1.msra.mxu0 0.0
      %859 = vmatprep.subr.mxu0 0.0
      %860 = vmatpush1.msra.mxu0 0.0
      %861 = vmatprep.mubr.f32.mxu0 0.0
      %862 = vmatmul.mubr.f32.gmra.mrb[0].mxu0 %v750
      %v863 = vpop.f32.mrb[0].mxu0
      %v864 = vadd.f32 %v671, %v863
      %v865 = vpop.f32.mrb[0].mxu0
      %v866 = vadd.f32 %v671, %v865
      %867 = vmatprep.mubr.f32.mxu0 0.0
      %868 = vmatmul.mubr.f32.gmra.mrb[0].mxu0 %v753
      %v869 = vpop.f32.mrb[0].mxu0
      %v870 = vadd.f32 %v676, %v869
      %v871 = vpop.f32.mrb[0].mxu0
      %v872 = vadd.f32 %v676, %v871
      %873 = vmatprep.mubr.f32.mxu0 0.0
      %874 = vmatmul.mubr.f32.gmra.mrb[0].mxu0 %v756
      %v875 = vpop.f32.mrb[0].mxu0
      %v876 = vadd.f32 %v681, %v875
      %v877 = vpop.f32.mrb[0].mxu0
      %v878 = vadd.f32 %v681, %v877
      %879 = vmatprep.mubr.f32.mxu0 0.0
      %880 = vmatmul.mubr.f32.gmra.mrb[0].mxu0 %v759
      %v881 = vpop.f32.mrb[0].mxu0
      %v882 = vadd.f32 %v686, %v881
      %v883 = vpop.f32.mrb[0].mxu0
      %v884 = vadd.f32 %v686, %v883
      %885 = vmatprep.mubr.f32.mxu0 0.0
      %886 = vmatmul.mubr.f32.gmra.mrb[0].mxu0 %v762
      %v887 = vpop.f32.mrb[0].mxu0
      %v888 = vadd.f32 %v691, %v887
      %v889 = vpop.f32.mrb[0].mxu0
      %v890 = vadd.f32 %v691, %v889
      %891 = vmatprep.mubr.f32.mxu0 0.0
      %892 = vmatmul.mubr.f32.gmra.mrb[0].mxu0 %v765
      %v893 = vpop.f32.mrb[0].mxu0
      %v894 = vadd.f32 %v696, %v893
      %v895 = vpop.f32.mrb[0].mxu0
      %v896 = vadd.f32 %v696, %v895
      %897 = vmatprep.mubr.f32.mxu0 0.0
      %898 = vmatmul.mubr.f32.gmra.mrb[0].mxu0 %v768
      %v899 = vpop.f32.mrb[0].mxu0
      %v900 = vadd.f32 %v701, %v899
      %v901 = vpop.f32.mrb[0].mxu0
      %v902 = vadd.f32 %v701, %v901
      %903 = vmatprep.mubr.f32.mxu0 0.0
      %904 = vmatmul.mubr.f32.gmra.mrb[0].mxu0 %v771
      %v905 = vpop.f32.mrb[0].mxu0
      %v906 = vadd.f32 %v706, %v905
      %v907 = vpop.f32.mrb[0].mxu0
      %v908 = vadd.f32 %v706, %v907
      %909 = vmatprep.mubr.f32.mxu0 0.0
      %910 = vmatmul.mubr.f32.gmra.mrb[0].mxu0 %v774
      %v911 = vpop.f32.mrb[0].mxu0
      %v912 = vadd.f32 %v711, %v911
      %v913 = vpop.f32.mrb[0].mxu0
      %v914 = vadd.f32 %v711, %v913
      %915 = vmatprep.mubr.f32.mxu0 0.0
      %916 = vmatmul.mubr.f32.gmra.mrb[0].mxu0 %v777
      %v917 = vpop.f32.mrb[0].mxu0
      %v918 = vadd.f32 %v716, %v917
      %v919 = vpop.f32.mrb[0].mxu0
      %v920 = vadd.f32 %v716, %v919
      %921 = vmatprep.mubr.f32.mxu0 0.0
      %922 = vmatmul.mubr.f32.gmra.mrb[0].mxu0 %v780
      %v923 = vpop.f32.mrb[0].mxu0
      %v924 = vadd.f32 %v721, %v923
      %v925 = vpop.f32.mrb[0].mxu0
      %v926 = vadd.f32 %v721, %v925
      %927 = vmatprep.mubr.f32.mxu0 0.0
      %928 = vmatmul.mubr.f32.gmra.mrb[0].mxu0 %v783
      %v929 = vpop.f32.mrb[0].mxu0
      %v930 = vadd.f32 %v726, %v929
      %v931 = vpop.f32.mrb[0].mxu0
      %v932 = vadd.f32 %v726, %v931
      %933 = vmatprep.mubr.f32.mxu0 0.0
      %934 = vmatmul.mubr.f32.gmra.mrb[0].mxu0 %v786
      %v935 = vpop.f32.mrb[0].mxu0
      %v936 = vadd.f32 %v731, %v935
      %v937 = vpop.f32.mrb[0].mxu0
      %v938 = vadd.f32 %v731, %v937
      %939 = vmatprep.mubr.f32.mxu0 0.0
      %940 = vmatmul.mubr.f32.gmra.mrb[0].mxu0 %v789
      %v941 = vpop.f32.mrb[0].mxu0
      %v942 = vadd.f32 %v736, %v941
      %v943 = vpop.f32.mrb[0].mxu0
      %v944 = vadd.f32 %v736, %v943
      %945 = vmatprep.mubr.f32.mxu0 0.0
      %946 = vmatmul.mubr.f32.gmra.mrb[0].mxu0 %v792
      %v947 = vpop.f32.mrb[0].mxu0
      %v948 = vadd.f32 %v741, %v947
      %v949 = vpop.f32.mrb[0].mxu0
      %v950 = vadd.f32 %v741, %v949
      %951 = vmatprep.mubr.f32.mxu0 0.0
      %952 = vmatmul.mubr.f32.gmra.mrb[0].mxu0 %v795
      %v953 = vpop.f32.mrb[0].mxu0
      %v954 = vadd.f32 %v746, %v953
      %v955 = vpop.f32.mrb[0].mxu0
      %v956 = vadd.f32 %v746, %v955
      %957 = vdwg.mxu0
      %v958 = vmax.f32 %v864, 0.0
      %v959 = vmax.f32 %v866, 0.0
      %v960 = vmax.f32 %v870, 0.0
      %v961 = vmax.f32 %v872, 0.0
      %v962 = vmax.f32 %v876, 0.0
      %v963 = vmax.f32 %v878, 0.0
      %v964 = vmax.f32 %v882, 0.0
      %v965 = vmax.f32 %v884, 0.0
      %v966 = vmax.f32 %v888, 0.0
      %v967 = vmax.f32 %v890, 0.0
      %v968 = vmax.f32 %v894, 0.0
      %v969 = vmax.f32 %v896, 0.0
      %v970 = vmax.f32 %v900, 0.0
      %v971 = vmax.f32 %v902, 0.0
      %v972 = vmax.f32 %v906, 0.0
      %v973 = vmax.f32 %v908, 0.0
      %v974 = vmax.f32 %v912, 0.0
      %v975 = vmax.f32 %v914, 0.0
      %v976 = vmax.f32 %v918, 0.0
      %v977 = vmax.f32 %v920, 0.0
      %v978 = vmax.f32 %v924, 0.0
      %v979 = vmax.f32 %v926, 0.0
      %v980 = vmax.f32 %v930, 0.0
      %v981 = vmax.f32 %v932, 0.0
      %v982 = vmax.f32 %v936, 0.0
      %v983 = vmax.f32 %v938, 0.0
      %v984 = vmax.f32 %v942, 0.0
      %v985 = vmax.f32 %v944, 0.0
      %v986 = vmax.f32 %v948, 0.0
      %v987 = vmax.f32 %v950, 0.0
      %v988 = vmax.f32 %v954, 0.0
      %v989 = vmax.f32 %v956, 0.0
      %v990 = vadd.f32 %v958, %v959
      %991 = vadd.xlane.f32.xlu0 %v990
      %v992 = vpop.xlane.xlu0 %991
      %v993 = vadd.f32 %v960, %v961
      %994 = vadd.xlane.f32.xlu0 %v993
      %v995 = vpop.xlane.xlu0 %994
      %v996 = vadd.f32 %v962, %v963
      %997 = vadd.xlane.f32.xlu0 %v996
      %v998 = vpop.xlane.xlu0 %997
      %v999 = vadd.f32 %v964, %v965
      %1000 = vadd.xlane.f32.xlu0 %v999
      %v1001 = vpop.xlane.xlu0 %1000
      %v1002 = vadd.f32 %v966, %v967
      %1003 = vadd.xlane.f32.xlu0 %v1002
      %v1004 = vpop.xlane.xlu0 %1003
      %v1005 = vadd.f32 %v968, %v969
      %1006 = vadd.xlane.f32.xlu0 %v1005
      %v1007 = vpop.xlane.xlu0 %1006
      %v1008 = vadd.f32 %v970, %v971
      %1009 = vadd.xlane.f32.xlu0 %v1008
      %v1010 = vpop.xlane.xlu0 %1009
      %v1011 = vadd.f32 %v972, %v973
      %1012 = vadd.xlane.f32.xlu0 %v1011
      %v1013 = vpop.xlane.xlu0 %1012
      %v1014 = vadd.f32 %v974, %v975
      %1015 = vadd.xlane.f32.xlu0 %v1014
      %v1016 = vpop.xlane.xlu0 %1015
      %v1017 = vadd.f32 %v976, %v977
      %1018 = vadd.xlane.f32.xlu0 %v1017
      %v1019 = vpop.xlane.xlu0 %1018
      %v1020 = vadd.f32 %v978, %v979
      %1021 = vadd.xlane.f32.xlu0 %v1020
      %v1022 = vpop.xlane.xlu0 %1021
      %v1023 = vadd.f32 %v980, %v981
      %1024 = vadd.xlane.f32.xlu0 %v1023
      %v1025 = vpop.xlane.xlu0 %1024
      %v1026 = vadd.f32 %v982, %v983
      %1027 = vadd.xlane.f32.xlu0 %v1026
      %v1028 = vpop.xlane.xlu0 %1027
      %v1029 = vadd.f32 %v984, %v985
      %1030 = vadd.xlane.f32.xlu0 %v1029
      %v1031 = vpop.xlane.xlu0 %1030
      %v1032 = vadd.f32 %v986, %v987
      %1033 = vadd.xlane.f32.xlu0 %v1032
      %v1034 = vpop.xlane.xlu0 %1033
      %v1035 = vadd.f32 %v988, %v989
      %1036 = vadd.xlane.f32.xlu0 %v1035
      %v1037 = vpop.xlane.xlu0 %1036
      %v1038 = vadd.f32 %v992, 0.0
      %v1039 = vadd.f32 %v995, 0.0
      %v1040 = vadd.f32 %v998, 0.0
      %v1041 = vadd.f32 %v1001, 0.0
      %v1042 = vadd.f32 %v1004, 0.0
      %v1043 = vadd.f32 %v1007, 0.0
      %v1044 = vadd.f32 %v1010, 0.0
      %v1045 = vadd.f32 %v1013, 0.0
      %v1046 = vadd.f32 %v1016, 0.0
      %v1047 = vadd.f32 %v1019, 0.0
      %v1048 = vadd.f32 %v1022, 0.0
      %v1049 = vadd.f32 %v1025, 0.0
      %v1050 = vadd.f32 %v1028, 0.0
      %v1051 = vadd.f32 %v1031, 0.0
      %v1052 = vadd.f32 %v1034, 0.0
      %v1053 = vadd.f32 %v1037, 0.0
      %v1054 = vmul.f32 %v1038, 0.00390625
      %v1055 = vmul.f32 %v1039, 0.00390625
      %v1056 = vmul.f32 %v1040, 0.00390625
      %v1057 = vmul.f32 %v1041, 0.00390625
      %v1058 = vmul.f32 %v1042, 0.00390625
      %v1059 = vmul.f32 %v1043, 0.00390625
      %v1060 = vmul.f32 %v1044, 0.00390625
      %v1061 = vmul.f32 %v1045, 0.00390625
      %v1062 = vmul.f32 %v1046, 0.00390625
      %v1063 = vmul.f32 %v1047, 0.00390625
      %v1064 = vmul.f32 %v1048, 0.00390625
      %v1065 = vmul.f32 %v1049, 0.00390625
      %v1066 = vmul.f32 %v1050, 0.00390625
      %v1067 = vmul.f32 %v1051, 0.00390625
      %v1068 = vmul.f32 %v1052, 0.00390625
      %v1069 = vmul.f32 %v1053, 0.00390625
      %vm1070 = vcmask 7168
      %1071 = vst.msk [vmem:[%s197] sm:$0xff] %vm1070, %v1054
      %1072 = vst.msk [vmem:[%s197 + $0x8] sm:$0xff] %vm1070, %v1055
      %1073 = vst.msk [vmem:[%s197 + $0x10] sm:$0xff] %vm1070, %v1056
      %1074 = vst.msk [vmem:[%s197 + $0x18] sm:$0xff] %vm1070, %v1057
      %1075 = vst.msk [vmem:[%s197 + $0x20] sm:$0xff] %vm1070, %v1058
      %1076 = vst.msk [vmem:[%s197 + $0x28] sm:$0xff] %vm1070, %v1059
      %1077 = vst.msk [vmem:[%s197 + $0x30] sm:$0xff] %vm1070, %v1060
      %1078 = vst.msk [vmem:[%s197 + $0x38] sm:$0xff] %vm1070, %v1061
      %1079 = vst.msk [vmem:[%s197 + $0x40] sm:$0xff] %vm1070, %v1062
      %1080 = vst.msk [vmem:[%s197 + $0x48] sm:$0xff] %vm1070, %v1063
      %1081 = vst.msk [vmem:[%s197 + $0x50] sm:$0xff] %vm1070, %v1064
      %1082 = vst.msk [vmem:[%s197 + $0x58] sm:$0xff] %vm1070, %v1065
      %1083 = vst.msk [vmem:[%s197 + $0x60] sm:$0xff] %vm1070, %v1066
      %1084 = vst.msk [vmem:[%s197 + $0x68] sm:$0xff] %vm1070, %v1067
      %1085 = vst.msk [vmem:[%s197 + $0x70] sm:$0xff] %vm1070, %v1068
      %1086 = vst.msk [vmem:[%s197 + $0x78] sm:$0xff] %vm1070, %v1069
      %p1087 = scmp.lt.s32.totalorder %s15, 1
      %s1088 = scalar_select %p1087, %s15, 1
      %s1089 = smul.addr %s1088, 16
      %s1090 = smul.addr %s1089, 8
      %s1091 = scalar_lea.vmem %s4, %s1090
      // Predicated region
      $region37: #{visual_encoder_forward.2} parent=35 // pred_check
        %p1092 = pneg %p122
      $region38: #{visual_encoder_forward.2} parent=35 // pred_check_branch
        %1094 = sbr.rel (%p1092) target = $region40
      $region39: #{visual_encoder_forward.2} parent=35 // pred_region
        _
      $region40: #{visual_encoder_forward.2} parent=35 // pred_fallthru
        _
    $region36: #{visual_encoder_forward.2} parent=5 // pred_fallthru
      _
    %p1095 = scmp.le.s32.totalorder 2, %s10
    // Predicated region
    $region41: #{visual_encoder_forward.2} parent=5 // pred_check
      %p1096 = pneg %p1095
    $region42: #{visual_encoder_forward.2} parent=5 // pred_check_branch
      %1098 = sbr.rel (%p1096) target = $region44
    $region43: #{visual_encoder_forward.2} parent=5 // pred_region
      %s1099 = ssub.s32 %s10, 2
      // Predicated region
      $region45: #{visual_encoder_forward.2} parent=43 // pred_check
        %p1100 = pneg %p128
      $region46: #{visual_encoder_forward.2} parent=43 // pred_check_branch
        %1102 = sbr.rel (%p1100) target = $region48
      $region47: #{visual_encoder_forward.2} parent=43 // pred_region
        %p1103 = scmp.lt.s32.totalorder %s16, 1
        %s1104 = scalar_select %p1103, %s16, 1
        %s1105 = smul.addr %s1104, 16
        %s1106 = smul.addr %s1105, 8
        %s1107 = scalar_lea.vmem %s4, %s1106
      $region48: #{visual_encoder_forward.2} parent=43 // pred_fallthru
        _
    $region44: #{visual_encoder_forward.2} parent=5 // pred_fallthru
      _
  $region6: #{visual_encoder_forward.2} parent=0 // loop_footer
    %s14 = sadd.s32 1, %s10
  $region7: #{visual_encoder_forward.2} parent=0 // loop_footer_branch
    %9 = sbr.rel target = $region3
  $region8: #{visual_encoder_forward.2} parent=0 // loop_exit
    _

</llo_original>
